<compile_context>
chip_gen: v7x
topology: tpu7x:2x2x1
jax: 0.10.0
libtpu: 0.0.40
codegen_flags: <defaults>
</compile_context>

<pallas_src>
import math

import jax
import jax.numpy as jnp
from jax.experimental import pallas as pl
from jax.experimental.pallas import tpu as pltpu


def _round_up(x, m):
    return (x + m - 1) // m * m


def _encoder_mlp_kernel(x_ref, w1_ref, b1_ref, w2_ref, b2_ref, w3_ref, b3_ref, o_ref):
    # x arrives in f32 (no extra XLA cast pass over HBM); cast to bf16 at the MXU input.
    x = x_ref[...].astype(jnp.bfloat16)
    # Layer 1: (TB, D)bf16 @ (D, 512)bf16 -> f32 acc, + bias, ReLU, cast to bf16 right away.
    h1 = jnp.dot(x, w1_ref[...], preferred_element_type=jnp.float32)
    h1 = jnp.maximum(h1 + b1_ref[...], 0.0).astype(jnp.bfloat16)
    # Layer 2: (TB, 512)bf16 @ (512, 512)bf16 -> f32 acc, + bias, ReLU, cast to bf16.
    h2 = jnp.dot(h1, w2_ref[...], preferred_element_type=jnp.float32)
    h2 = jnp.maximum(h2 + b2_ref[...], 0.0).astype(jnp.bfloat16)
    # Layer 3: (TB, 512)bf16 @ (512, latent_pad)bf16 -> f32 acc, + bias.
    out = jnp.dot(h2, w3_ref[...], preferred_element_type=jnp.float32)
    o_ref[...] = (out + b3_ref[...]).astype(o_ref.dtype)


def encoder_forward(x_nchw, params, *, latent_dim, block_b=512):
    """x_nchw: (B, C, H, W) float32. params: f32 master weights w1/w2/w3 ((in,out) layout)
    and f32 biases b1/b2/b3."""
    B = x_nchw.shape[0]
    # Flatten (same semantics as x.view(B, -1)); stays f32 -- bf16 cast happens in-kernel.
    x_flat = x_nchw.reshape(B, -1)
    D = x_flat.shape[1]

    # bf16 weights for the MXU (halves weight DMA); f32 masters stay in params for parity.
    w1 = params["w1"].astype(jnp.bfloat16)
    w2 = params["w2"].astype(jnp.bfloat16)
    w3 = params["w3"].astype(jnp.bfloat16)
    b1 = params["b1"].reshape(1, -1).astype(jnp.float32)
    b2 = params["b2"].reshape(1, -1).astype(jnp.float32)
    b3 = params["b3"].reshape(1, -1).astype(jnp.float32)
    hidden = w1.shape[1]

    # Pad the contraction dim D to a multiple of 256 (MXU depth on v6e/v7x) so x loads and
    # w1 tiles stay dense/aligned. No-op for already-aligned D (e.g. 256); zero rows of w1
    # and zero columns of x contribute nothing to the dot.
    d_pad = _round_up(D, 256)
    if d_pad != D:
        w1 = jnp.pad(w1, ((0, d_pad - D), (0, 0)))

    # Pad the output feature dim to a lane multiple (128) for a dense, unmasked store.
    n_pad = _round_up(latent_dim, 128)
    if n_pad != latent_dim:
        w3 = jnp.pad(w3, ((0, 0), (0, n_pad - latent_dim)))
        b3 = jnp.pad(b3, ((0, 0), (0, n_pad - latent_dim)))

    # Batch tiling: big tiles (up to block_b) amortize the ~0.35us per-grid-step overhead and
    # fill the 256-wide MXU. Tile is sized to the batch so the last tile carries minimal pad
    # rows, and when the batch is big enough we force >=2 grid steps so the "parallel" axis
    # actually splits across v7x's two TensorCores.
    n_tiles = max(1, math.ceil(B / block_b))
    if n_tiles == 1 and B >= 16:
        n_tiles = 2
    tb = _round_up(math.ceil(B / n_tiles), 8)   # sublane multiple
    b_pad = n_tiles * tb

    if b_pad != B or d_pad != D:
        x_flat = jnp.pad(x_flat, ((0, b_pad - B), (0, d_pad - D)))

    def _resident(shape):
        # Constant-index (VMEM-resident) blocks: single-buffer them; Pallas would otherwise
        # allocate two buffers per weight even though it never re-DMAs them.
        try:
            return pl.BlockSpec(shape, lambda i: (0, 0), pipeline_mode=pl.Buffered(1))
        except TypeError:  # older JAX without pipeline_mode: fall back to default buffering
            return pl.BlockSpec(shape, lambda i: (0, 0))

    out = pl.pallas_call(
        _encoder_mlp_kernel,
        out_shape=jax.ShapeDtypeStruct((b_pad, n_pad), jnp.float32),
        grid_spec=pltpu.PrefetchScalarGridSpec(
            num_scalar_prefetch=0,
            grid=(n_tiles,),
            in_specs=[
                pl.BlockSpec((tb, d_pad), lambda i: (i, 0)),  # x tile (f32, streams per step)
                _resident((d_pad, hidden)),                   # w1 (resident across steps)
                _resident((1, hidden)),                       # b1
                _resident((hidden, hidden)),                  # w2
                _resident((1, hidden)),                       # b2
                _resident((hidden, n_pad)),                   # w3 (lane-padded)
                _resident((1, n_pad)),                        # b3 (lane-padded)
            ],
            out_specs=pl.BlockSpec((tb, n_pad), lambda i: (i, 0)),
        ),
        compiler_params=pltpu.CompilerParams(
            dimension_semantics=("parallel",),        # batch tiles split across TCs on v7x
            vmem_limit_bytes=64 * 1024 * 1024,        # v5e default scoped VMEM is only 16 MiB
        ),
    )(x_flat, w1, b1, w2, b2, w3, b3)

    # Strip batch padding and the padded latent lanes.
    return out[:B, :latent_dim]


def init_params(key, in_features, hidden, latent_dim):
    """nn.Linear-style uniform(-1/sqrt(fan_in), 1/sqrt(fan_in)) init.
    Weights kept as f32 masters in (in_features, out_features) layout; cast to bf16 at call."""
    ks = jax.random.split(key, 6)

    def linear(kw, kb, fan_in, fan_out):
        bound = 1.0 / jnp.sqrt(fan_in)
        w = jax.random.uniform(kw, (fan_in, fan_out), jnp.float32, -bound, bound)
        b = jax.random.uniform(kb, (fan_out,), jnp.float32, -bound, bound)
        return w, b

    w1, b1 = linear(ks[0], ks[1], in_features, hidden)
    w2, b2 = linear(ks[2], ks[3], hidden, hidden)
    w3, b3 = linear(ks[4], ks[5], hidden, latent_dim)
    return {"w1": w1, "b1": b1, "w2": w2, "b2": b2, "w3": w3, "b3": b3}


if __name__ == "__main__":
    # Small shapes consistent with the module: image batch (B=2, C=1, H=16, W=16)
    # => flattened feature dim D = 256; latent_dim = 32.
    B, C, H, W = 2, 1, 16, 16
    D = C * H * W
    HIDDEN = 512
    LATENT_DIM = 32

    key = jax.random.PRNGKey(0)
    k_x, k_p = jax.random.split(key)
    x = jax.random.normal(k_x, (B, C, H, W), dtype=jnp.float32)
    params = init_params(k_p, D, HIDDEN, LATENT_DIM)

    z = encoder_forward(x, params, latent_dim=LATENT_DIM)
    jax.block_until_ready(z)

    # Pure-JAX reference with the same numerics (bf16 matmul inputs, f32 accumulation/bias).
    xf = x.reshape(B, -1).astype(jnp.bfloat16).astype(jnp.float32)
    w1 = params["w1"].astype(jnp.bfloat16).astype(jnp.float32)
    w2 = params["w2"].astype(jnp.bfloat16).astype(jnp.float32)
    w3 = params["w3"].astype(jnp.bfloat16).astype(jnp.float32)
    h1 = jnp.maximum(xf @ w1 + params["b1"], 0.0)
    h2 = jnp.maximum(h1.astype(jnp.bfloat16).astype(jnp.float32) @ w2 + params["b2"], 0.0)
    z_ref = h2.astype(jnp.bfloat16).astype(jnp.float32) @ w3 + params["b3"]

    assert z.shape == (B, LATENT_DIM)
    err = jnp.max(jnp.abs(z - z_ref))
    assert jnp.allclose(z, z_ref, atol=2e-2, rtol=2e-2), f"max abs err {err}"

    print("KERNEL_OK")
</pallas_src>

<mosaic_0001>
module attributes {stable_mosaic.version = 11 : i64} {
  func.func @_encoder_mlp_kernel(%arg0: i32, %arg1: memref<8x256xf32, #tpu.memory_space<vmem>>, %arg2: memref<256x512xbf16, #tpu.memory_space<vmem>>, %arg3: memref<1x512xf32, #tpu.memory_space<vmem>>, %arg4: memref<512x512xbf16, #tpu.memory_space<vmem>>, %arg5: memref<1x512xf32, #tpu.memory_space<vmem>>, %arg6: memref<512x128xbf16, #tpu.memory_space<vmem>>, %arg7: memref<1x128xf32, #tpu.memory_space<vmem>>, %arg8: memref<8x128xf32, #tpu.memory_space<vmem>>) attributes {dimension_semantics = [#tpu.dimension_semantics<parallel>], iteration_bounds = array<i64: 1>, scalar_prefetch = 0 : i64, scratch_operands = 0 : i64, tpu.core_type = #tpu.core_type<tc>, window_params = [{transform_indices = @transform_0, window_bounds = array<i64: 8, 256>}, {pipeline_mode = #tpu.pipeline_mode<synchronous>, transform_indices = @transform_1, window_bounds = array<i64: 256, 512>}, {pipeline_mode = #tpu.pipeline_mode<synchronous>, transform_indices = @transform_2, window_bounds = array<i64: 1, 512>}, {pipeline_mode = #tpu.pipeline_mode<synchronous>, transform_indices = @transform_3, window_bounds = array<i64: 512, 512>}, {pipeline_mode = #tpu.pipeline_mode<synchronous>, transform_indices = @transform_4, window_bounds = array<i64: 1, 512>}, {pipeline_mode = #tpu.pipeline_mode<synchronous>, transform_indices = @transform_5, window_bounds = array<i64: 512, 128>}, {pipeline_mode = #tpu.pipeline_mode<synchronous>, transform_indices = @transform_6, window_bounds = array<i64: 1, 128>}, {transform_indices = @transform_7, window_bounds = array<i64: 8, 128>}]} {
    %c0 = arith.constant 0 : index
    %c0_0 = arith.constant 0 : index
    %0 = vector.load %arg1[%c0, %c0_0] : memref<8x256xf32, #tpu.memory_space<vmem>>, vector<8x256xf32>
    %1 = arith.truncf %0 : vector<8x256xf32> to vector<8x256xbf16>
    %c0_1 = arith.constant 0 : index
    %c0_2 = arith.constant 0 : index
    %2 = vector.load %arg2[%c0_1, %c0_2] : memref<256x512xbf16, #tpu.memory_space<vmem>>, vector<256x512xbf16>
    %cst = arith.constant dense<0.000000e+00> : vector<8x512xf32>
    %3 = tpu.matmul %1, %2, %cst {dimension_numbers = #tpu.dot_dimension_numbers<[1], [0], [0], [1], [0, 0, 1, 1], [], []>} : vector<8x256xbf16>, vector<256x512xbf16>, vector<8x512xf32> -> vector<8x512xf32>
    %c0_3 = arith.constant 0 : index
    %c0_4 = arith.constant 0 : index
    %4 = vector.load %arg3[%c0_3, %c0_4] : memref<1x512xf32, #tpu.memory_space<vmem>>, vector<1x512xf32>
    %5 = vector.broadcast %4 : vector<1x512xf32> to vector<8x512xf32>
    %6 = arith.addf %3, %5 : vector<8x512xf32>
    %cst_5 = arith.constant 0.000000e+00 : f32
    %7 = vector.broadcast %cst_5 : f32 to vector<8x512xf32>
    %8 = arith.maximumf %6, %7 : vector<8x512xf32>
    %9 = arith.truncf %8 : vector<8x512xf32> to vector<8x512xbf16>
    %c0_6 = arith.constant 0 : index
    %c0_7 = arith.constant 0 : index
    %10 = vector.load %arg4[%c0_6, %c0_7] : memref<512x512xbf16, #tpu.memory_space<vmem>>, vector<512x512xbf16>
    %cst_8 = arith.constant dense<0.000000e+00> : vector<8x512xf32>
    %11 = tpu.matmul %9, %10, %cst_8 {dimension_numbers = #tpu.dot_dimension_numbers<[1], [0], [0], [1], [0, 0, 1, 1], [], []>} : vector<8x512xbf16>, vector<512x512xbf16>, vector<8x512xf32> -> vector<8x512xf32>
    %c0_9 = arith.constant 0 : index
    %c0_10 = arith.constant 0 : index
    %12 = vector.load %arg5[%c0_9, %c0_10] : memref<1x512xf32, #tpu.memory_space<vmem>>, vector<1x512xf32>
    %13 = vector.broadcast %12 : vector<1x512xf32> to vector<8x512xf32>
    %14 = arith.addf %11, %13 : vector<8x512xf32>
    %cst_11 = arith.constant 0.000000e+00 : f32
    %15 = vector.broadcast %cst_11 : f32 to vector<8x512xf32>
    %16 = arith.maximumf %14, %15 : vector<8x512xf32>
    %17 = arith.truncf %16 : vector<8x512xf32> to vector<8x512xbf16>
    %c0_12 = arith.constant 0 : index
    %c0_13 = arith.constant 0 : index
    %18 = vector.load %arg6[%c0_12, %c0_13] : memref<512x128xbf16, #tpu.memory_space<vmem>>, vector<512x128xbf16>
    %cst_14 = arith.constant dense<0.000000e+00> : vector<8x128xf32>
    %19 = tpu.matmul %17, %18, %cst_14 {dimension_numbers = #tpu.dot_dimension_numbers<[1], [0], [0], [1], [0, 0, 1, 1], [], []>} : vector<8x512xbf16>, vector<512x128xbf16>, vector<8x128xf32> -> vector<8x128xf32>
    %c0_15 = arith.constant 0 : index
    %c0_16 = arith.constant 0 : index
    %20 = vector.load %arg7[%c0_15, %c0_16] : memref<1x128xf32, #tpu.memory_space<vmem>>, vector<1x128xf32>
    %21 = vector.broadcast %20 : vector<1x128xf32> to vector<8x128xf32>
    %22 = arith.addf %19, %21 : vector<8x128xf32>
    %c0_17 = arith.constant 0 : index
    %c0_18 = arith.constant 0 : index
    %23 = vector.load %arg8[%c0_17, %c0_18] : memref<8x128xf32, #tpu.memory_space<vmem>>, vector<8x128xf32>
    tpu.vector_store %arg8[%c0_17, %c0_18], %22 {strides = array<i32>} : memref<8x128xf32, #tpu.memory_space<vmem>>, vector<8x128xf32>,
    return
  }
  func.func @transform_0(%arg0: i32) -> (i32, i32) {
    %c0_i32 = arith.constant 0 : i32
    %c0_i32_0 = arith.constant 0 : i32
    return %arg0, %c0_i32 : i32, i32
  }
  func.func @transform_1(%arg0: i32) -> (i32, i32) {
    %c0_i32 = arith.constant 0 : i32
    %c0_i32_0 = arith.constant 0 : i32
    %c0_i32_1 = arith.constant 0 : i32
    return %c0_i32, %c0_i32_0 : i32, i32
  }
  func.func @transform_2(%arg0: i32) -> (i32, i32) {
    %c0_i32 = arith.constant 0 : i32
    %c0_i32_0 = arith.constant 0 : i32
    %c0_i32_1 = arith.constant 0 : i32
    return %c0_i32, %c0_i32_0 : i32, i32
  }
  func.func @transform_3(%arg0: i32) -> (i32, i32) {
    %c0_i32 = arith.constant 0 : i32
    %c0_i32_0 = arith.constant 0 : i32
    %c0_i32_1 = arith.constant 0 : i32
    return %c0_i32, %c0_i32_0 : i32, i32
  }
  func.func @transform_4(%arg0: i32) -> (i32, i32) {
    %c0_i32 = arith.constant 0 : i32
    %c0_i32_0 = arith.constant 0 : i32
    %c0_i32_1 = arith.constant 0 : i32
    return %c0_i32, %c0_i32_0 : i32, i32
  }
  func.func @transform_5(%arg0: i32) -> (i32, i32) {
    %c0_i32 = arith.constant 0 : i32
    %c0_i32_0 = arith.constant 0 : i32
    %c0_i32_1 = arith.constant 0 : i32
    return %c0_i32, %c0_i32_0 : i32, i32
  }
  func.func @transform_6(%arg0: i32) -> (i32, i32) {
    %c0_i32 = arith.constant 0 : i32
    %c0_i32_0 = arith.constant 0 : i32
    %c0_i32_1 = arith.constant 0 : i32
    return %c0_i32, %c0_i32_0 : i32, i32
  }
  func.func @transform_7(%arg0: i32) -> (i32, i32) {
    %c0_i32 = arith.constant 0 : i32
    %c0_i32_0 = arith.constant 0 : i32
    return %arg0, %c0_i32 : i32, i32
  }
}

</mosaic_0001>

<llo_original>
// kernel: tpu_custom_call.1
$region0: #{tpu_custom_call.1}
  #allocation0 [shape = 'u32[]', space=smem, size = 0x4, offset = 0x4, fixed_abs, tag = 'smem constant byte address 0x4 - core index']
  #allocation1 [shape = 'u32[144,128]{1,0:T(1,128)}', space=vmem, size = 0x12000, scoped, tag = 'internal scratch']
  %s0 = inlined_call_operand.hbm [shape: f32[8,256], index: 0, kind: input, shape index: {}]
  %s1 = inlined_call_operand.hbm [shape: bf16[256,512], index: 1, kind: input, shape index: {}]
  %s2 = inlined_call_operand.hbm [shape: f32[1,512], index: 2, kind: input, shape index: {}]
  %s3 = inlined_call_operand.hbm [shape: bf16[512,512], index: 3, kind: input, shape index: {}]
  %s4 = inlined_call_operand.hbm [shape: f32[1,512], index: 4, kind: input, shape index: {}]
  %s5 = inlined_call_operand.hbm [shape: bf16[512,128], index: 5, kind: input, shape index: {}]
  %s6 = inlined_call_operand.hbm [shape: f32[1,128], index: 6, kind: input, shape index: {}]
  %s7 = inlined_call_operand.hbm [shape: f32[8,128], index: 7, kind: output, shape index: {}]
  %s8 = sld [smem:[#allocation0]]
  $region66: #{tpu_custom_call.1} parent=0
    _
  %s10 = ssub.s32 1, %s8
  %s11 = scalar_select 0, %s10, %s8
  $region1: #{tpu_custom_call.1} parent=0
    #allocation2 [shape = 'u8[8192]{0}', space=vmem, size = 0x2000, scoped, tag = 'input window, operand 0, single buffered']
    #allocation3 [shape = 's32[1]{0}', space=sflag, size = 0x4, scoped, tag = 'scoped memory for tpu_custom_call.1']
    #allocation4 [shape = 's32[1]{0}', space=sflag, size = 0x4, scoped, tag = 'scoped memory for tpu_custom_call.1']
    #allocation5 [shape = 'u8[262144]{0}', space=vmem, size = 0x40000, scoped, tag = 'input window, operand 1, single buffered']
    #allocation6 [shape = 's32[1]{0}', space=sflag, size = 0x4, scoped, tag = 'scoped memory for tpu_custom_call.1']
    #allocation7 [shape = 'u8[2048]{0}', space=vmem, size = 0x800, scoped, tag = 'input window, operand 2, single buffered']
    #allocation8 [shape = 'u8[524288]{0}', space=vmem, size = 0x80000, scoped, tag = 'input window, operand 3, single buffered']
    #allocation9 [shape = 's32[1]{0}', space=sflag, size = 0x4, scoped, tag = 'scoped memory for tpu_custom_call.1']
    #allocation10 [shape = 'u8[2048]{0}', space=vmem, size = 0x800, scoped, tag = 'input window, operand 4, single buffered']
    #allocation11 [shape = 'u8[131072]{0}', space=vmem, size = 0x20000, scoped, tag = 'input window, operand 5, single buffered']
    #allocation12 [shape = 's32[1]{0}', space=sflag, size = 0x4, scoped, tag = 'scoped memory for tpu_custom_call.1']
    #allocation13 [shape = 'u8[512]{0}', space=vmem, size = 0x400, scoped, tag = 'input window, operand 6, single buffered']
    #allocation14 [shape = 'u8[4096]{0}', space=vmem, size = 0x1000, scoped, tag = 'output window, operand 0, single buffered']
    %12 = vsyncpa [#allocation3], 0
    %13 = vsyncpa [#allocation6], 0
    %14 = vsyncpa [#allocation9], 0
    %15 = vsyncpa [#allocation12], 0
    %16 = vsyncpa [#allocation4], 0
    // Predicated region
    $region2: #{tpu_custom_call.1} parent=1 // pred_check
      _
    $region3: #{tpu_custom_call.1} parent=1 // pred_check_branch
      %18 = sbr.rel (0) target = $region5
    $region4: #{tpu_custom_call.1} parent=1 // pred_region
      %s20 = ssub.s32 256, 256
      %21 = vsyncadd [#allocation3], %s20
      %s23 = sshll.u32 [#allocation2], 4
      %s24 = int_to_ptr.vmem [resolvable:$true] %s23
      %26 = dma.hbm_to_vmem [thread:$0]  %s0, 256, %s24, [#allocation3]
    $region5: #{tpu_custom_call.1} parent=1 // pred_fallthru
      _
    // Predicated region
    $region6: #{tpu_custom_call.1} parent=1 // pred_check
      _
    $region7: #{tpu_custom_call.1} parent=1 // pred_check_branch
      %28 = sbr.rel (0) target = $region9
    $region8: #{tpu_custom_call.1} parent=1 // pred_region
      %s30 = ssub.s32 8192, 8192
      %31 = vsyncadd [#allocation6], %s30
      %s32 = sshll.u32 [#allocation5], 4
      %s33 = int_to_ptr.vmem [resolvable:$true] %s32
      %38 = dma.hbm_to_vmem [thread:$0]  %s1, 8192, %s33, [#allocation6], 256, 256, 16
    $region9: #{tpu_custom_call.1} parent=1 // pred_fallthru
      _
    // Predicated region
    $region10: #{tpu_custom_call.1} parent=1 // pred_check
      _
    $region11: #{tpu_custom_call.1} parent=1 // pred_check_branch
      %40 = sbr.rel (0) target = $region13
    $region12: #{tpu_custom_call.1} parent=1 // pred_region
      %s42 = ssub.s32 64, 64
      %43 = vsyncadd [#allocation6], %s42
      %s45 = sshll.u32 [#allocation7], 4
      %s46 = int_to_ptr.vmem [resolvable:$true] %s45
      %48 = dma.hbm_to_vmem [thread:$0]  %s2, 64, %s46, [#allocation6]
    $region13: #{tpu_custom_call.1} parent=1 // pred_fallthru
      _
    // Predicated region
    $region14: #{tpu_custom_call.1} parent=1 // pred_check
      _
    $region15: #{tpu_custom_call.1} parent=1 // pred_check_branch
      %50 = sbr.rel (0) target = $region17
    $region16: #{tpu_custom_call.1} parent=1 // pred_region
      %s52 = ssub.s32 16384, 16384
      %53 = vsyncadd [#allocation9], %s52
      %s54 = sshll.u32 [#allocation8], 4
      %s55 = int_to_ptr.vmem [resolvable:$true] %s54
      %60 = dma.hbm_to_vmem [thread:$0]  %s3, 16384, %s55, [#allocation9], 256, 256, 16
    $region17: #{tpu_custom_call.1} parent=1 // pred_fallthru
      _
    // Predicated region
    $region18: #{tpu_custom_call.1} parent=1 // pred_check
      _
    $region19: #{tpu_custom_call.1} parent=1 // pred_check_branch
      %62 = sbr.rel (0) target = $region21
    $region20: #{tpu_custom_call.1} parent=1 // pred_region
      %s64 = ssub.s32 64, 64
      %65 = vsyncadd [#allocation9], %s64
      %s67 = sshll.u32 [#allocation10], 4
      %s68 = int_to_ptr.vmem [resolvable:$true] %s67
      %70 = dma.hbm_to_vmem [thread:$0]  %s4, 64, %s68, [#allocation9]
    $region21: #{tpu_custom_call.1} parent=1 // pred_fallthru
      _
    // Predicated region
    $region22: #{tpu_custom_call.1} parent=1 // pred_check
      _
    $region23: #{tpu_custom_call.1} parent=1 // pred_check_branch
      %72 = sbr.rel (0) target = $region25
    $region24: #{tpu_custom_call.1} parent=1 // pred_region
      %s74 = ssub.s32 4096, 4096
      %75 = vsyncadd [#allocation12], %s74
      %s76 = sshll.u32 [#allocation11], 4
      %s77 = int_to_ptr.vmem [resolvable:$true] %s76
      %82 = dma.hbm_to_vmem [thread:$0]  %s5, 4096, %s77, [#allocation12], 64, 64, 4
    $region25: #{tpu_custom_call.1} parent=1 // pred_fallthru
      _
    // Predicated region
    $region26: #{tpu_custom_call.1} parent=1 // pred_check
      _
    $region27: #{tpu_custom_call.1} parent=1 // pred_check_branch
      %84 = sbr.rel (0) target = $region29
    $region28: #{tpu_custom_call.1} parent=1 // pred_region
      %s86 = ssub.s32 16, 16
      %87 = vsyncadd [#allocation12], %s86
      %s89 = sshll.u32 [#allocation13], 4
      %s90 = int_to_ptr.vmem [resolvable:$true] %s89
      %92 = dma.hbm_to_vmem [thread:$0]  %s6, 16, %s90, [#allocation12]
    $region29: #{tpu_custom_call.1} parent=1 // pred_fallthru
      _
    // Predicated region
    $region30: #{tpu_custom_call.1} parent=1 // pred_check
      _
    $region31: #{tpu_custom_call.1} parent=1 // pred_check_branch
      %94 = sbr.rel (0) target = $region33
    $region32: #{tpu_custom_call.1} parent=1 // pred_region
      %95 = dma.done [#allocation3], 256
    $region33: #{tpu_custom_call.1} parent=1 // pred_fallthru
      _
    // Predicated region
    $region34: #{tpu_custom_call.1} parent=1 // pred_check
      _
    $region35: #{tpu_custom_call.1} parent=1 // pred_check_branch
      %97 = sbr.rel (0) target = $region37
    $region36: #{tpu_custom_call.1} parent=1 // pred_region
      %98 = dma.done [#allocation6], 8192
    $region37: #{tpu_custom_call.1} parent=1 // pred_fallthru
      _
    // Predicated region
    $region38: #{tpu_custom_call.1} parent=1 // pred_check
      _
    $region39: #{tpu_custom_call.1} parent=1 // pred_check_branch
      %100 = sbr.rel (0) target = $region41
    $region40: #{tpu_custom_call.1} parent=1 // pred_region
      %101 = dma.done [#allocation6], 64
    $region41: #{tpu_custom_call.1} parent=1 // pred_fallthru
      _
    // Predicated region
    $region42: #{tpu_custom_call.1} parent=1 // pred_check
      _
    $region43: #{tpu_custom_call.1} parent=1 // pred_check_branch
      %103 = sbr.rel (0) target = $region45
    $region44: #{tpu_custom_call.1} parent=1 // pred_region
      %104 = dma.done [#allocation9], 16384
    $region45: #{tpu_custom_call.1} parent=1 // pred_fallthru
      _
    // Predicated region
    $region46: #{tpu_custom_call.1} parent=1 // pred_check
      _
    $region47: #{tpu_custom_call.1} parent=1 // pred_check_branch
      %106 = sbr.rel (0) target = $region49
    $region48: #{tpu_custom_call.1} parent=1 // pred_region
      %107 = dma.done [#allocation9], 64
    $region49: #{tpu_custom_call.1} parent=1 // pred_fallthru
      _
    // Predicated region
    $region50: #{tpu_custom_call.1} parent=1 // pred_check
      _
    $region51: #{tpu_custom_call.1} parent=1 // pred_check_branch
      %109 = sbr.rel (0) target = $region53
    $region52: #{tpu_custom_call.1} parent=1 // pred_region
      %110 = dma.done [#allocation12], 4096
    $region53: #{tpu_custom_call.1} parent=1 // pred_fallthru
      _
    // Predicated region
    $region54: #{tpu_custom_call.1} parent=1 // pred_check
      _
    $region55: #{tpu_custom_call.1} parent=1 // pred_check_branch
      %112 = sbr.rel (0) target = $region57
    $region56: #{tpu_custom_call.1} parent=1 // pred_region
      %113 = dma.done [#allocation12], 16
    $region57: #{tpu_custom_call.1} parent=1 // pred_fallthru
      _
    %v115 = vld [vmem:[#allocation2] sm:$0xff]
    %v116 = vld [vmem:[#allocation2 + $0x8] sm:$0xff]
    %v117 = vpack.c.bf16 %v115, %v115
    %v118 = vpack.c.bf16 %v116, %v116
    %v119 = vld [vmem:[#allocation5] sm:$0xff]
    %v120 = vld [vmem:[#allocation5 + $0x8] sm:$0xff]
    %v121 = vld [vmem:[#allocation5 + $0x10] sm:$0xff]
    %v122 = vld [vmem:[#allocation5 + $0x18] sm:$0xff]
    %v123 = vld [vmem:[#allocation5 + $0x20] sm:$0xff]
    %v124 = vld [vmem:[#allocation5 + $0x28] sm:$0xff]
    %v125 = vld [vmem:[#allocation5 + $0x30] sm:$0xff]
    %v126 = vld [vmem:[#allocation5 + $0x38] sm:$0xff]
    %v127 = vld [vmem:[#allocation5 + $0x40] sm:$0xff]
    %v128 = vld [vmem:[#allocation5 + $0x48] sm:$0xff]
    %v129 = vld [vmem:[#allocation5 + $0x50] sm:$0xff]
    %v130 = vld [vmem:[#allocation5 + $0x58] sm:$0xff]
    %v131 = vld [vmem:[#allocation5 + $0x60] sm:$0xff]
    %v132 = vld [vmem:[#allocation5 + $0x68] sm:$0xff]
    %v133 = vld [vmem:[#allocation5 + $0x70] sm:$0xff]
    %v134 = vld [vmem:[#allocation5 + $0x78] sm:$0xff]
    %v135 = vld [vmem:[#allocation5 + $0x80] sm:$0xff]
    %v136 = vld [vmem:[#allocation5 + $0x88] sm:$0xff]
    %v137 = vld [vmem:[#allocation5 + $0x90] sm:$0xff]
    %v138 = vld [vmem:[#allocation5 + $0x98] sm:$0xff]
    %v139 = vld [vmem:[#allocation5 + $0xa0] sm:$0xff]
    %v140 = vld [vmem:[#allocation5 + $0xa8] sm:$0xff]
    %v141 = vld [vmem:[#allocation5 + $0xb0] sm:$0xff]
    %v142 = vld [vmem:[#allocation5 + $0xb8] sm:$0xff]
    %v143 = vld [vmem:[#allocation5 + $0xc0] sm:$0xff]
    %v144 = vld [vmem:[#allocation5 + $0xc8] sm:$0xff]
    %v145 = vld [vmem:[#allocation5 + $0xd0] sm:$0xff]
    %v146 = vld [vmem:[#allocation5 + $0xd8] sm:$0xff]
    %v147 = vld [vmem:[#allocation5 + $0xe0] sm:$0xff]
    %v148 = vld [vmem:[#allocation5 + $0xe8] sm:$0xff]
    %v149 = vld [vmem:[#allocation5 + $0xf0] sm:$0xff]
    %v150 = vld [vmem:[#allocation5 + $0xf8] sm:$0xff]
    %v151 = vld [vmem:[#allocation5 + $0x100] sm:$0xff]
    %v152 = vld [vmem:[#allocation5 + $0x108] sm:$0xff]
    %v153 = vld [vmem:[#allocation5 + $0x110] sm:$0xff]
    %v154 = vld [vmem:[#allocation5 + $0x118] sm:$0xff]
    %v155 = vld [vmem:[#allocation5 + $0x120] sm:$0xff]
    %v156 = vld [vmem:[#allocation5 + $0x128] sm:$0xff]
    %v157 = vld [vmem:[#allocation5 + $0x130] sm:$0xff]
    %v158 = vld [vmem:[#allocation5 + $0x138] sm:$0xff]
    %v159 = vld [vmem:[#allocation5 + $0x140] sm:$0xff]
    %v160 = vld [vmem:[#allocation5 + $0x148] sm:$0xff]
    %v161 = vld [vmem:[#allocation5 + $0x150] sm:$0xff]
    %v162 = vld [vmem:[#allocation5 + $0x158] sm:$0xff]
    %v163 = vld [vmem:[#allocation5 + $0x160] sm:$0xff]
    %v164 = vld [vmem:[#allocation5 + $0x168] sm:$0xff]
    %v165 = vld [vmem:[#allocation5 + $0x170] sm:$0xff]
    %v166 = vld [vmem:[#allocation5 + $0x178] sm:$0xff]
    %v167 = vld [vmem:[#allocation5 + $0x180] sm:$0xff]
    %v168 = vld [vmem:[#allocation5 + $0x188] sm:$0xff]
    %v169 = vld [vmem:[#allocation5 + $0x190] sm:$0xff]
    %v170 = vld [vmem:[#allocation5 + $0x198] sm:$0xff]
    %v171 = vld [vmem:[#allocation5 + $0x1a0] sm:$0xff]
    %v172 = vld [vmem:[#allocation5 + $0x1a8] sm:$0xff]
    %v173 = vld [vmem:[#allocation5 + $0x1b0] sm:$0xff]
    %v174 = vld [vmem:[#allocation5 + $0x1b8] sm:$0xff]
    %v175 = vld [vmem:[#allocation5 + $0x1c0] sm:$0xff]
    %v176 = vld [vmem:[#allocation5 + $0x1c8] sm:$0xff]
    %v177 = vld [vmem:[#allocation5 + $0x1d0] sm:$0xff]
    %v178 = vld [vmem:[#allocation5 + $0x1d8] sm:$0xff]
    %v179 = vld [vmem:[#allocation5 + $0x1e0] sm:$0xff]
    %v180 = vld [vmem:[#allocation5 + $0x1e8] sm:$0xff]
    %v181 = vld [vmem:[#allocation5 + $0x1f0] sm:$0xff]
    %v182 = vld [vmem:[#allocation5 + $0x1f8] sm:$0xff]
    %v183 = vld [vmem:[#allocation7] sm:$0xf]
    %v185 = vlaneseq
    %v186 = vshrl.u32 %v185, 7
    %v187 = vsub.s32 0, %v186
    %v188 = vrot.slane %v183, %v187
    %v189 = vlaneseq
    %v190 = vshrl.u32 %v189, 7
    %v191 = vsub.s32 1, %v190
    %v192 = vrot.slane %v183, %v191
    %v193 = vlaneseq
    %v194 = vshrl.u32 %v193, 7
    %v195 = vsub.s32 2, %v194
    %v196 = vrot.slane %v183, %v195
    %v197 = vlaneseq
    %v198 = vshrl.u32 %v197, 7
    %v199 = vsub.s32 3, %v198
    %v200 = vrot.slane %v183, %v199
    %v269 = vunpack.c.l.b16 %v119
    %v270 = vunpack.c.h.b16 %v119
    %v271 = vunpack.c.l.b16 %v120
    %v272 = vunpack.c.h.b16 %v120
    %v273 = vunpack.c.l.b16 %v121
    %v274 = vunpack.c.h.b16 %v121
    %v275 = vunpack.c.l.b16 %v122
    %v276 = vunpack.c.h.b16 %v122
    %v277 = vunpack.c.l.b16 %v123
    %v278 = vunpack.c.h.b16 %v123
    %v279 = vunpack.c.l.b16 %v124
    %v280 = vunpack.c.h.b16 %v124
    %v281 = vunpack.c.l.b16 %v125
    %v282 = vunpack.c.h.b16 %v125
    %v283 = vunpack.c.l.b16 %v126
    %v284 = vunpack.c.h.b16 %v126
    %v285 = vunpack.c.l.b16 %v127
    %v286 = vunpack.c.h.b16 %v127
    %v287 = vunpack.c.l.b16 %v128
    %v288 = vunpack.c.h.b16 %v128
    %v289 = vunpack.c.l.b16 %v129
    %v290 = vunpack.c.h.b16 %v129
    %v291 = vunpack.c.l.b16 %v130
    %v292 = vunpack.c.h.b16 %v130
    %v293 = vunpack.c.l.b16 %v131
    %v294 = vunpack.c.h.b16 %v131
    %v295 = vunpack.c.l.b16 %v132
    %v296 = vunpack.c.h.b16 %v132
    %v297 = vunpack.c.l.b16 %v133
    %v298 = vunpack.c.h.b16 %v133
    %v299 = vunpack.c.l.b16 %v134
    %v300 = vunpack.c.h.b16 %v134
    %v301 = vunpack.c.l.b16 %v135
    %v302 = vunpack.c.h.b16 %v135
    %v303 = vunpack.c.l.b16 %v136
    %v304 = vunpack.c.h.b16 %v136
    %v305 = vunpack.c.l.b16 %v137
    %v306 = vunpack.c.h.b16 %v137
    %v307 = vunpack.c.l.b16 %v138
    %v308 = vunpack.c.h.b16 %v138
    %v309 = vunpack.c.l.b16 %v139
    %v310 = vunpack.c.h.b16 %v139
    %v311 = vunpack.c.l.b16 %v140
    %v312 = vunpack.c.h.b16 %v140
    %v313 = vunpack.c.l.b16 %v141
    %v314 = vunpack.c.h.b16 %v141
    %v315 = vunpack.c.l.b16 %v142
    %v316 = vunpack.c.h.b16 %v142
    %v317 = vunpack.c.l.b16 %v143
    %v318 = vunpack.c.h.b16 %v143
    %v319 = vunpack.c.l.b16 %v144
    %v320 = vunpack.c.h.b16 %v144
    %v321 = vunpack.c.l.b16 %v145
    %v322 = vunpack.c.h.b16 %v145
    %v323 = vunpack.c.l.b16 %v146
    %v324 = vunpack.c.h.b16 %v146
    %v325 = vunpack.c.l.b16 %v147
    %v326 = vunpack.c.h.b16 %v147
    %v327 = vunpack.c.l.b16 %v148
    %v328 = vunpack.c.h.b16 %v148
    %v329 = vunpack.c.l.b16 %v149
    %v330 = vunpack.c.h.b16 %v149
    %v331 = vunpack.c.l.b16 %v150
    %v332 = vunpack.c.h.b16 %v150
    %v333 = vunpack.c.l.b16 %v151
    %v334 = vunpack.c.h.b16 %v151
    %v335 = vunpack.c.l.b16 %v152
    %v336 = vunpack.c.h.b16 %v152
    %v337 = vunpack.c.l.b16 %v153
    %v338 = vunpack.c.h.b16 %v153
    %v339 = vunpack.c.l.b16 %v154
    %v340 = vunpack.c.h.b16 %v154
    %v341 = vunpack.c.l.b16 %v155
    %v342 = vunpack.c.h.b16 %v155
    %v343 = vunpack.c.l.b16 %v156
    %v344 = vunpack.c.h.b16 %v156
    %v345 = vunpack.c.l.b16 %v157
    %v346 = vunpack.c.h.b16 %v157
    %v347 = vunpack.c.l.b16 %v158
    %v348 = vunpack.c.h.b16 %v158
    %v349 = vunpack.c.l.b16 %v159
    %v350 = vunpack.c.h.b16 %v159
    %v351 = vunpack.c.l.b16 %v160
    %v352 = vunpack.c.h.b16 %v160
    %v353 = vunpack.c.l.b16 %v161
    %v354 = vunpack.c.h.b16 %v161
    %v355 = vunpack.c.l.b16 %v162
    %v356 = vunpack.c.h.b16 %v162
    %v357 = vunpack.c.l.b16 %v163
    %v358 = vunpack.c.h.b16 %v163
    %v359 = vunpack.c.l.b16 %v164
    %v360 = vunpack.c.h.b16 %v164
    %v361 = vunpack.c.l.b16 %v165
    %v362 = vunpack.c.h.b16 %v165
    %v363 = vunpack.c.l.b16 %v166
    %v364 = vunpack.c.h.b16 %v166
    %v365 = vunpack.c.l.b16 %v167
    %v366 = vunpack.c.h.b16 %v167
    %v367 = vunpack.c.l.b16 %v168
    %v368 = vunpack.c.h.b16 %v168
    %v369 = vunpack.c.l.b16 %v169
    %v370 = vunpack.c.h.b16 %v169
    %v371 = vunpack.c.l.b16 %v170
    %v372 = vunpack.c.h.b16 %v170
    %v373 = vunpack.c.l.b16 %v171
    %v374 = vunpack.c.h.b16 %v171
    %v375 = vunpack.c.l.b16 %v172
    %v376 = vunpack.c.h.b16 %v172
    %v377 = vunpack.c.l.b16 %v173
    %v378 = vunpack.c.h.b16 %v173
    %v379 = vunpack.c.l.b16 %v174
    %v380 = vunpack.c.h.b16 %v174
    %v381 = vunpack.c.l.b16 %v175
    %v382 = vunpack.c.h.b16 %v175
    %v383 = vunpack.c.l.b16 %v176
    %v384 = vunpack.c.h.b16 %v176
    %v385 = vunpack.c.l.b16 %v177
    %v386 = vunpack.c.h.b16 %v177
    %v387 = vunpack.c.l.b16 %v178
    %v388 = vunpack.c.h.b16 %v178
    %v389 = vunpack.c.l.b16 %v179
    %v390 = vunpack.c.h.b16 %v179
    %v391 = vunpack.c.l.b16 %v180
    %v392 = vunpack.c.h.b16 %v180
    %v393 = vunpack.c.l.b16 %v181
    %v394 = vunpack.c.h.b16 %v181
    %v395 = vunpack.c.l.b16 %v182
    %v396 = vunpack.c.h.b16 %v182
    %v397 = vpack.c.b16 %v273, %v269
    %v398 = vpack.c.b16 %v274, %v270
    %v399 = vpack.c.b16 %v275, %v271
    %v400 = vpack.c.b16 %v276, %v272
    %v401 = vpack.c.b16 %v281, %v277
    %v402 = vpack.c.b16 %v282, %v278
    %v403 = vpack.c.b16 %v283, %v279
    %v404 = vpack.c.b16 %v284, %v280
    %v405 = vpack.c.b16 %v289, %v285
    %v406 = vpack.c.b16 %v290, %v286
    %v407 = vpack.c.b16 %v291, %v287
    %v408 = vpack.c.b16 %v292, %v288
    %v409 = vpack.c.b16 %v297, %v293
    %v410 = vpack.c.b16 %v298, %v294
    %v411 = vpack.c.b16 %v299, %v295
    %v412 = vpack.c.b16 %v300, %v296
    %v413 = vpack.c.b16 %v305, %v301
    %v414 = vpack.c.b16 %v306, %v302
    %v415 = vpack.c.b16 %v307, %v303
    %v416 = vpack.c.b16 %v308, %v304
    %v417 = vpack.c.b16 %v313, %v309
    %v418 = vpack.c.b16 %v314, %v310
    %v419 = vpack.c.b16 %v315, %v311
    %v420 = vpack.c.b16 %v316, %v312
    %v421 = vpack.c.b16 %v321, %v317
    %v422 = vpack.c.b16 %v322, %v318
    %v423 = vpack.c.b16 %v323, %v319
    %v424 = vpack.c.b16 %v324, %v320
    %v425 = vpack.c.b16 %v329, %v325
    %v426 = vpack.c.b16 %v330, %v326
    %v427 = vpack.c.b16 %v331, %v327
    %v428 = vpack.c.b16 %v332, %v328
    %v429 = vpack.c.b16 %v337, %v333
    %v430 = vpack.c.b16 %v338, %v334
    %v431 = vpack.c.b16 %v339, %v335
    %v432 = vpack.c.b16 %v340, %v336
    %v433 = vpack.c.b16 %v345, %v341
    %v434 = vpack.c.b16 %v346, %v342
    %v435 = vpack.c.b16 %v347, %v343
    %v436 = vpack.c.b16 %v348, %v344
    %v437 = vpack.c.b16 %v353, %v349
    %v438 = vpack.c.b16 %v354, %v350
    %v439 = vpack.c.b16 %v355, %v351
    %v440 = vpack.c.b16 %v356, %v352
    %v441 = vpack.c.b16 %v361, %v357
    %v442 = vpack.c.b16 %v362, %v358
    %v443 = vpack.c.b16 %v363, %v359
    %v444 = vpack.c.b16 %v364, %v360
    %v445 = vpack.c.b16 %v369, %v365
    %v446 = vpack.c.b16 %v370, %v366
    %v447 = vpack.c.b16 %v371, %v367
    %v448 = vpack.c.b16 %v372, %v368
    %v449 = vpack.c.b16 %v377, %v373
    %v450 = vpack.c.b16 %v378, %v374
    %v451 = vpack.c.b16 %v379, %v375
    %v452 = vpack.c.b16 %v380, %v376
    %v453 = vpack.c.b16 %v385, %v381
    %v454 = vpack.c.b16 %v386, %v382
    %v455 = vpack.c.b16 %v387, %v383
    %v456 = vpack.c.b16 %v388, %v384
    %v457 = vpack.c.b16 %v393, %v389
    %v458 = vpack.c.b16 %v394, %v390
    %v459 = vpack.c.b16 %v395, %v391
    %v460 = vpack.c.b16 %v396, %v392
    %525 = vmatprep.subr.bf16.mxu0 %v398
    %526 = vmatpush1.bf16.msra.mxu0 %v397
    %527 = vmatprep.subr.bf16.mxu0 %v402
    %528 = vmatpush1.bf16.msra.mxu0 %v401
    %529 = vmatprep.subr.bf16.mxu0 %v406
    %530 = vmatpush1.bf16.msra.mxu0 %v405
    %531 = vmatprep.subr.bf16.mxu0 %v410
    %532 = vmatpush1.bf16.msra.mxu0 %v409
    %533 = vmatprep.subr.bf16.mxu0 %v414
    %534 = vmatpush1.bf16.msra.mxu0 %v413
    %535 = vmatprep.subr.bf16.mxu0 %v418
    %536 = vmatpush1.bf16.msra.mxu0 %v417
    %537 = vmatprep.subr.bf16.mxu0 %v422
    %538 = vmatpush1.bf16.msra.mxu0 %v421
    %539 = vmatprep.subr.bf16.mxu0 %v426
    %540 = vmatpush1.bf16.msra.mxu0 %v425
    %541 = vmatprep.subr.bf16.mxu0 %v430
    %542 = vmatpush1.bf16.msra.mxu0 %v429
    %543 = vmatprep.subr.bf16.mxu0 %v434
    %544 = vmatpush1.bf16.msra.mxu0 %v433
    %545 = vmatprep.subr.bf16.mxu0 %v438
    %546 = vmatpush1.bf16.msra.mxu0 %v437
    %547 = vmatprep.subr.bf16.mxu0 %v442
    %548 = vmatpush1.bf16.msra.mxu0 %v441
    %549 = vmatprep.subr.bf16.mxu0 %v446
    %550 = vmatpush1.bf16.msra.mxu0 %v445
    %551 = vmatprep.subr.bf16.mxu0 %v450
    %552 = vmatpush1.bf16.msra.mxu0 %v449
    %553 = vmatprep.subr.bf16.mxu0 %v454
    %554 = vmatpush1.bf16.msra.mxu0 %v453
    %555 = vmatprep.subr.bf16.mxu0 %v458
    %556 = vmatpush1.bf16.msra.mxu0 %v457
    %557 = vmatprep.mubr.bf16.mxu0 %v118
    %558 = vmatmul.mubr.bf16.gmra.mrb[0].mxu0 %v117
    %v559 = vpop.f32.mrb[0].mxu0
    %v560 = vadd.f32 %v188, %v559
    %v561 = vpop.f32.mrb[0].mxu0
    %v562 = vadd.f32 %v192, %v561
    %v563 = vpop.f32.mrb[0].mxu0
    %v564 = vpop.f32.mrb[0].mxu0
    %565 = vdwg.mxu0
    %566 = vmatprep.subr.bf16.mxu0 %v400
    %567 = vmatpush1.bf16.msra.mxu0 %v399
    %568 = vmatprep.subr.bf16.mxu0 %v404
    %569 = vmatpush1.bf16.msra.mxu0 %v403
    %570 = vmatprep.subr.bf16.mxu0 %v408
    %571 = vmatpush1.bf16.msra.mxu0 %v407
    %572 = vmatprep.subr.bf16.mxu0 %v412
    %573 = vmatpush1.bf16.msra.mxu0 %v411
    %574 = vmatprep.subr.bf16.mxu0 %v416
    %575 = vmatpush1.bf16.msra.mxu0 %v415
    %576 = vmatprep.subr.bf16.mxu0 %v420
    %577 = vmatpush1.bf16.msra.mxu0 %v419
    %578 = vmatprep.subr.bf16.mxu0 %v424
    %579 = vmatpush1.bf16.msra.mxu0 %v423
    %580 = vmatprep.subr.bf16.mxu0 %v428
    %581 = vmatpush1.bf16.msra.mxu0 %v427
    %582 = vmatprep.subr.bf16.mxu0 %v432
    %583 = vmatpush1.bf16.msra.mxu0 %v431
    %584 = vmatprep.subr.bf16.mxu0 %v436
    %585 = vmatpush1.bf16.msra.mxu0 %v435
    %586 = vmatprep.subr.bf16.mxu0 %v440
    %587 = vmatpush1.bf16.msra.mxu0 %v439
    %588 = vmatprep.subr.bf16.mxu0 %v444
    %589 = vmatpush1.bf16.msra.mxu0 %v443
    %590 = vmatprep.subr.bf16.mxu0 %v448
    %591 = vmatpush1.bf16.msra.mxu0 %v447
    %592 = vmatprep.subr.bf16.mxu0 %v452
    %593 = vmatpush1.bf16.msra.mxu0 %v451
    %594 = vmatprep.subr.bf16.mxu0 %v456
    %595 = vmatpush1.bf16.msra.mxu0 %v455
    %596 = vmatprep.subr.bf16.mxu0 %v460
    %597 = vmatpush1.bf16.msra.mxu0 %v459
    %598 = vmatprep.mubr.bf16.mxu0 %v118
    %599 = vmatmul.mubr.bf16.gmra.mrb[0].mxu0 %v117
    %v600 = vpop.f32.mrb[0].mxu0
    %v601 = vadd.f32 %v196, %v600
    %v602 = vpop.f32.mrb[0].mxu0
    %v603 = vadd.f32 %v200, %v602
    %v604 = vpop.f32.mrb[0].mxu0
    %v605 = vpop.f32.mrb[0].mxu0
    %606 = vdwg.mxu0
    %v607 = vmax.f32 %v560, 0.0
    %v608 = vmax.f32 %v562, 0.0
    %v609 = vmax.f32 %v601, 0.0
    %v610 = vmax.f32 %v603, 0.0
    %v611 = vpack.c.bf16 %v607, %v607
    %v612 = vpack.c.bf16 %v608, %v608
    %v613 = vpack.c.bf16 %v609, %v609
    %v614 = vpack.c.bf16 %v610, %v610
    %v615 = vld [vmem:[#allocation8] sm:$0xff]
    %v616 = vld [vmem:[#allocation8 + $0x8] sm:$0xff]
    %v617 = vld [vmem:[#allocation8 + $0x10] sm:$0xff]
    %v618 = vld [vmem:[#allocation8 + $0x18] sm:$0xff]
    %v619 = vld [vmem:[#allocation8 + $0x20] sm:$0xff]
    %v620 = vld [vmem:[#allocation8 + $0x28] sm:$0xff]
    %v621 = vld [vmem:[#allocation8 + $0x30] sm:$0xff]
    %v622 = vld [vmem:[#allocation8 + $0x38] sm:$0xff]
    %v623 = vld [vmem:[#allocation8 + $0x40] sm:$0xff]
    %v624 = vld [vmem:[#allocation8 + $0x48] sm:$0xff]
    %v625 = vld [vmem:[#allocation8 + $0x50] sm:$0xff]
    %v626 = vld [vmem:[#allocation8 + $0x58] sm:$0xff]
    %v627 = vld [vmem:[#allocation8 + $0x60] sm:$0xff]
    %v628 = vld [vmem:[#allocation8 + $0x68] sm:$0xff]
    %v629 = vld [vmem:[#allocation8 + $0x70] sm:$0xff]
    %v630 = vld [vmem:[#allocation8 + $0x78] sm:$0xff]
    %v631 = vld [vmem:[#allocation8 + $0x80] sm:$0xff]
    %v632 = vld [vmem:[#allocation8 + $0x88] sm:$0xff]
    %v633 = vld [vmem:[#allocation8 + $0x90] sm:$0xff]
    %v634 = vld [vmem:[#allocation8 + $0x98] sm:$0xff]
    %v635 = vld [vmem:[#allocation8 + $0xa0] sm:$0xff]
    %v636 = vld [vmem:[#allocation8 + $0xa8] sm:$0xff]
    %v637 = vld [vmem:[#allocation8 + $0xb0] sm:$0xff]
    %v638 = vld [vmem:[#allocation8 + $0xb8] sm:$0xff]
    %v639 = vld [vmem:[#allocation8 + $0xc0] sm:$0xff]
    %v640 = vld [vmem:[#allocation8 + $0xc8] sm:$0xff]
    %v641 = vld [vmem:[#allocation8 + $0xd0] sm:$0xff]
    %v642 = vld [vmem:[#allocation8 + $0xd8] sm:$0xff]
    %v643 = vld [vmem:[#allocation8 + $0xe0] sm:$0xff]
    %v644 = vld [vmem:[#allocation8 + $0xe8] sm:$0xff]
    %v645 = vld [vmem:[#allocation8 + $0xf0] sm:$0xff]
    %v646 = vld [vmem:[#allocation8 + $0xf8] sm:$0xff]
    %v647 = vld [vmem:[#allocation8 + $0x100] sm:$0xff]
    %v648 = vld [vmem:[#allocation8 + $0x108] sm:$0xff]
    %v649 = vld [vmem:[#allocation8 + $0x110] sm:$0xff]
    %v650 = vld [vmem:[#allocation8 + $0x118] sm:$0xff]
    %v651 = vld [vmem:[#allocation8 + $0x120] sm:$0xff]
    %v652 = vld [vmem:[#allocation8 + $0x128] sm:$0xff]
    %v653 = vld [vmem:[#allocation8 + $0x130] sm:$0xff]
    %v654 = vld [vmem:[#allocation8 + $0x138] sm:$0xff]
    %v655 = vld [vmem:[#allocation8 + $0x140] sm:$0xff]
    %v656 = vld [vmem:[#allocation8 + $0x148] sm:$0xff]
    %v657 = vld [vmem:[#allocation8 + $0x150] sm:$0xff]
    %v658 = vld [vmem:[#allocation8 + $0x158] sm:$0xff]
    %v659 = vld [vmem:[#allocation8 + $0x160] sm:$0xff]
    %v660 = vld [vmem:[#allocation8 + $0x168] sm:$0xff]
    %v661 = vld [vmem:[#allocation8 + $0x170] sm:$0xff]
    %v662 = vld [vmem:[#allocation8 + $0x178] sm:$0xff]
    %v663 = vld [vmem:[#allocation8 + $0x180] sm:$0xff]
    %v664 = vld [vmem:[#allocation8 + $0x188] sm:$0xff]
    %v665 = vld [vmem:[#allocation8 + $0x190] sm:$0xff]
    %v666 = vld [vmem:[#allocation8 + $0x198] sm:$0xff]
    %v667 = vld [vmem:[#allocation8 + $0x1a0] sm:$0xff]
    %v668 = vld [vmem:[#allocation8 + $0x1a8] sm:$0xff]
    %v669 = vld [vmem:[#allocation8 + $0x1b0] sm:$0xff]
    %v670 = vld [vmem:[#allocation8 + $0x1b8] sm:$0xff]
    %v671 = vld [vmem:[#allocation8 + $0x1c0] sm:$0xff]
    %v672 = vld [vmem:[#allocation8 + $0x1c8] sm:$0xff]
    %v673 = vld [vmem:[#allocation8 + $0x1d0] sm:$0xff]
    %v674 = vld [vmem:[#allocation8 + $0x1d8] sm:$0xff]
    %v675 = vld [vmem:[#allocation8 + $0x1e0] sm:$0xff]
    %v676 = vld [vmem:[#allocation8 + $0x1e8] sm:$0xff]
    %v677 = vld [vmem:[#allocation8 + $0x1f0] sm:$0xff]
    %v678 = vld [vmem:[#allocation8 + $0x1f8] sm:$0xff]
    %v679 = vld [vmem:[#allocation8 + $0x200] sm:$0xff]
    %v680 = vld [vmem:[#allocation8 + $0x208] sm:$0xff]
    %v681 = vld [vmem:[#allocation8 + $0x210] sm:$0xff]
    %v682 = vld [vmem:[#allocation8 + $0x218] sm:$0xff]
    %v683 = vld [vmem:[#allocation8 + $0x220] sm:$0xff]
    %v684 = vld [vmem:[#allocation8 + $0x228] sm:$0xff]
    %v685 = vld [vmem:[#allocation8 + $0x230] sm:$0xff]
    %v686 = vld [vmem:[#allocation8 + $0x238] sm:$0xff]
    %v687 = vld [vmem:[#allocation8 + $0x240] sm:$0xff]
    %v688 = vld [vmem:[#allocation8 + $0x248] sm:$0xff]
    %v689 = vld [vmem:[#allocation8 + $0x250] sm:$0xff]
    %v690 = vld [vmem:[#allocation8 + $0x258] sm:$0xff]
    %v691 = vld [vmem:[#allocation8 + $0x260] sm:$0xff]
    %v692 = vld [vmem:[#allocation8 + $0x268] sm:$0xff]
    %v693 = vld [vmem:[#allocation8 + $0x270] sm:$0xff]
    %v694 = vld [vmem:[#allocation8 + $0x278] sm:$0xff]
    %v695 = vld [vmem:[#allocation8 + $0x280] sm:$0xff]
    %v696 = vld [vmem:[#allocation8 + $0x288] sm:$0xff]
    %v697 = vld [vmem:[#allocation8 + $0x290] sm:$0xff]
    %v698 = vld [vmem:[#allocation8 + $0x298] sm:$0xff]
    %v699 = vld [vmem:[#allocation8 + $0x2a0] sm:$0xff]
    %v700 = vld [vmem:[#allocation8 + $0x2a8] sm:$0xff]
    %v701 = vld [vmem:[#allocation8 + $0x2b0] sm:$0xff]
    %v702 = vld [vmem:[#allocation8 + $0x2b8] sm:$0xff]
    %v703 = vld [vmem:[#allocation8 + $0x2c0] sm:$0xff]
    %v704 = vld [vmem:[#allocation8 + $0x2c8] sm:$0xff]
    %v705 = vld [vmem:[#allocation8 + $0x2d0] sm:$0xff]
    %v706 = vld [vmem:[#allocation8 + $0x2d8] sm:$0xff]
    %v707 = vld [vmem:[#allocation8 + $0x2e0] sm:$0xff]
    %v708 = vld [vmem:[#allocation8 + $0x2e8] sm:$0xff]
    %v709 = vld [vmem:[#allocation8 + $0x2f0] sm:$0xff]
    %v710 = vld [vmem:[#allocation8 + $0x2f8] sm:$0xff]
    %v711 = vld [vmem:[#allocation8 + $0x300] sm:$0xff]
    %v712 = vld [vmem:[#allocation8 + $0x308] sm:$0xff]
    %v713 = vld [vmem:[#allocation8 + $0x310] sm:$0xff]
    %v714 = vld [vmem:[#allocation8 + $0x318] sm:$0xff]
    %v715 = vld [vmem:[#allocation8 + $0x320] sm:$0xff]
    %v716 = vld [vmem:[#allocation8 + $0x328] sm:$0xff]
    %v717 = vld [vmem:[#allocation8 + $0x330] sm:$0xff]
    %v718 = vld [vmem:[#allocation8 + $0x338] sm:$0xff]
    %v719 = vld [vmem:[#allocation8 + $0x340] sm:$0xff]
    %v720 = vld [vmem:[#allocation8 + $0x348] sm:$0xff]
    %v721 = vld [vmem:[#allocation8 + $0x350] sm:$0xff]
    %v722 = vld [vmem:[#allocation8 + $0x358] sm:$0xff]
    %v723 = vld [vmem:[#allocation8 + $0x360] sm:$0xff]
    %v724 = vld [vmem:[#allocation8 + $0x368] sm:$0xff]
    %v725 = vld [vmem:[#allocation8 + $0x370] sm:$0xff]
    %v726 = vld [vmem:[#allocation8 + $0x378] sm:$0xff]
    %v727 = vld [vmem:[#allocation8 + $0x380] sm:$0xff]
    %v728 = vld [vmem:[#allocation8 + $0x388] sm:$0xff]
    %v729 = vld [vmem:[#allocation8 + $0x390] sm:$0xff]
    %v730 = vld [vmem:[#allocation8 + $0x398] sm:$0xff]
    %v731 = vld [vmem:[#allocation8 + $0x3a0] sm:$0xff]
    %v732 = vld [vmem:[#allocation8 + $0x3a8] sm:$0xff]
    %v733 = vld [vmem:[#allocation8 + $0x3b0] sm:$0xff]
    %v734 = vld [vmem:[#allocation8 + $0x3b8] sm:$0xff]
    %v735 = vld [vmem:[#allocation8 + $0x3c0] sm:$0xff]
    %v736 = vld [vmem:[#allocation8 + $0x3c8] sm:$0xff]
    %v737 = vld [vmem:[#allocation8 + $0x3d0] sm:$0xff]
    %v738 = vld [vmem:[#allocation8 + $0x3d8] sm:$0xff]
    %v739 = vld [vmem:[#allocation8 + $0x3e0] sm:$0xff]
    %v740 = vld [vmem:[#allocation8 + $0x3e8] sm:$0xff]
    %v741 = vld [vmem:[#allocation8 + $0x3f0] sm:$0xff]
    %v742 = vld [vmem:[#allocation8 + $0x3f8] sm:$0xff]
    %v743 = vld [vmem:[#allocation10] sm:$0xf]
    %v745 = vlaneseq
    %v746 = vshrl.u32 %v745, 7
    %v747 = vsub.s32 0, %v746
    %v748 = vrot.slane %v743, %v747
    %v749 = vlaneseq
    %v750 = vshrl.u32 %v749, 7
    %v751 = vsub.s32 1, %v750
    %v752 = vrot.slane %v743, %v751
    %v753 = vlaneseq
    %v754 = vshrl.u32 %v753, 7
    %v755 = vsub.s32 2, %v754
    %v756 = vrot.slane %v743, %v755
    %v757 = vlaneseq
    %v758 = vshrl.u32 %v757, 7
    %v759 = vsub.s32 3, %v758
    %v760 = vrot.slane %v743, %v759
    %v893 = vunpack.c.l.b16 %v615
    %v894 = vunpack.c.h.b16 %v615
    %v895 = vunpack.c.l.b16 %v616
    %v896 = vunpack.c.h.b16 %v616
    %v897 = vunpack.c.l.b16 %v617
    %v898 = vunpack.c.h.b16 %v617
    %v899 = vunpack.c.l.b16 %v618
    %v900 = vunpack.c.h.b16 %v618
    %v901 = vunpack.c.l.b16 %v619
    %v902 = vunpack.c.h.b16 %v619
    %v903 = vunpack.c.l.b16 %v620
    %v904 = vunpack.c.h.b16 %v620
    %v905 = vunpack.c.l.b16 %v621
    %v906 = vunpack.c.h.b16 %v621
    %v907 = vunpack.c.l.b16 %v622
    %v908 = vunpack.c.h.b16 %v622
    %v909 = vunpack.c.l.b16 %v623
    %v910 = vunpack.c.h.b16 %v623
    %v911 = vunpack.c.l.b16 %v624
    %v912 = vunpack.c.h.b16 %v624
    %v913 = vunpack.c.l.b16 %v625
    %v914 = vunpack.c.h.b16 %v625
    %v915 = vunpack.c.l.b16 %v626
    %v916 = vunpack.c.h.b16 %v626
    %v917 = vunpack.c.l.b16 %v627
    %v918 = vunpack.c.h.b16 %v627
    %v919 = vunpack.c.l.b16 %v628
    %v920 = vunpack.c.h.b16 %v628
    %v921 = vunpack.c.l.b16 %v629
    %v922 = vunpack.c.h.b16 %v629
    %v923 = vunpack.c.l.b16 %v630
    %v924 = vunpack.c.h.b16 %v630
    %v925 = vunpack.c.l.b16 %v631
    %v926 = vunpack.c.h.b16 %v631
    %v927 = vunpack.c.l.b16 %v632
    %v928 = vunpack.c.h.b16 %v632
    %v929 = vunpack.c.l.b16 %v633
    %v930 = vunpack.c.h.b16 %v633
    %v931 = vunpack.c.l.b16 %v634
    %v932 = vunpack.c.h.b16 %v634
    %v933 = vunpack.c.l.b16 %v635
    %v934 = vunpack.c.h.b16 %v635
    %v935 = vunpack.c.l.b16 %v636
    %v936 = vunpack.c.h.b16 %v636
    %v937 = vunpack.c.l.b16 %v637
    %v938 = vunpack.c.h.b16 %v637
    %v939 = vunpack.c.l.b16 %v638
    %v940 = vunpack.c.h.b16 %v638
    %v941 = vunpack.c.l.b16 %v639
    %v942 = vunpack.c.h.b16 %v639
    %v943 = vunpack.c.l.b16 %v640
    %v944 = vunpack.c.h.b16 %v640
    %v945 = vunpack.c.l.b16 %v641
    %v946 = vunpack.c.h.b16 %v641
    %v947 = vunpack.c.l.b16 %v642
    %v948 = vunpack.c.h.b16 %v642
    %v949 = vunpack.c.l.b16 %v643
    %v950 = vunpack.c.h.b16 %v643
    %v951 = vunpack.c.l.b16 %v644
    %v952 = vunpack.c.h.b16 %v644
    %v953 = vunpack.c.l.b16 %v645
    %v954 = vunpack.c.h.b16 %v645
    %v955 = vunpack.c.l.b16 %v646
    %v956 = vunpack.c.h.b16 %v646
    %v957 = vunpack.c.l.b16 %v647
    %v958 = vunpack.c.h.b16 %v647
    %v959 = vunpack.c.l.b16 %v648
    %v960 = vunpack.c.h.b16 %v648
    %v961 = vunpack.c.l.b16 %v649
    %v962 = vunpack.c.h.b16 %v649
    %v963 = vunpack.c.l.b16 %v650
    %v964 = vunpack.c.h.b16 %v650
    %v965 = vunpack.c.l.b16 %v651
    %v966 = vunpack.c.h.b16 %v651
    %v967 = vunpack.c.l.b16 %v652
    %v968 = vunpack.c.h.b16 %v652
    %v969 = vunpack.c.l.b16 %v653
    %v970 = vunpack.c.h.b16 %v653
    %v971 = vunpack.c.l.b16 %v654
    %v972 = vunpack.c.h.b16 %v654
    %v973 = vunpack.c.l.b16 %v655
    %v974 = vunpack.c.h.b16 %v655
    %v975 = vunpack.c.l.b16 %v656
    %v976 = vunpack.c.h.b16 %v656
    %v977 = vunpack.c.l.b16 %v657
    %v978 = vunpack.c.h.b16 %v657
    %v979 = vunpack.c.l.b16 %v658
    %v980 = vunpack.c.h.b16 %v658
    %v981 = vunpack.c.l.b16 %v659
    %v982 = vunpack.c.h.b16 %v659
    %v983 = vunpack.c.l.b16 %v660
    %v984 = vunpack.c.h.b16 %v660
    %v985 = vunpack.c.l.b16 %v661
    %v986 = vunpack.c.h.b16 %v661
    %v987 = vunpack.c.l.b16 %v662
    %v988 = vunpack.c.h.b16 %v662
    %v989 = vunpack.c.l.b16 %v663
    %v990 = vunpack.c.h.b16 %v663
    %v991 = vunpack.c.l.b16 %v664
    %v992 = vunpack.c.h.b16 %v664
    %v993 = vunpack.c.l.b16 %v665
    %v994 = vunpack.c.h.b16 %v665
    %v995 = vunpack.c.l.b16 %v666
    %v996 = vunpack.c.h.b16 %v666
    %v997 = vunpack.c.l.b16 %v667
    %v998 = vunpack.c.h.b16 %v667
    %v999 = vunpack.c.l.b16 %v668
    %v1000 = vunpack.c.h.b16 %v668
    %v1001 = vunpack.c.l.b16 %v669
    %v1002 = vunpack.c.h.b16 %v669
    %v1003 = vunpack.c.l.b16 %v670
    %v1004 = vunpack.c.h.b16 %v670
    %v1005 = vunpack.c.l.b16 %v671
    %v1006 = vunpack.c.h.b16 %v671
    %v1007 = vunpack.c.l.b16 %v672
    %v1008 = vunpack.c.h.b16 %v672
    %v1009 = vunpack.c.l.b16 %v673
    %v1010 = vunpack.c.h.b16 %v673
    %v1011 = vunpack.c.l.b16 %v674
    %v1012 = vunpack.c.h.b16 %v674
    %v1013 = vunpack.c.l.b16 %v675
    %v1014 = vunpack.c.h.b16 %v675
    %v1015 = vunpack.c.l.b16 %v676
    %v1016 = vunpack.c.h.b16 %v676
    %v1017 = vunpack.c.l.b16 %v677
    %v1018 = vunpack.c.h.b16 %v677
    %v1019 = vunpack.c.l.b16 %v678
    %v1020 = vunpack.c.h.b16 %v678
    %v1021 = vunpack.c.l.b16 %v679
    %v1022 = vunpack.c.h.b16 %v679
    %v1023 = vunpack.c.l.b16 %v680
    %v1024 = vunpack.c.h.b16 %v680
    %v1025 = vunpack.c.l.b16 %v681
    %v1026 = vunpack.c.h.b16 %v681
    %v1027 = vunpack.c.l.b16 %v682
    %v1028 = vunpack.c.h.b16 %v682
    %v1029 = vunpack.c.l.b16 %v683
    %v1030 = vunpack.c.h.b16 %v683
    %v1031 = vunpack.c.l.b16 %v684
    %v1032 = vunpack.c.h.b16 %v684
    %v1033 = vunpack.c.l.b16 %v685
    %v1034 = vunpack.c.h.b16 %v685
    %v1035 = vunpack.c.l.b16 %v686
    %v1036 = vunpack.c.h.b16 %v686
    %v1037 = vunpack.c.l.b16 %v687
    %v1038 = vunpack.c.h.b16 %v687
    %v1039 = vunpack.c.l.b16 %v688
    %v1040 = vunpack.c.h.b16 %v688
    %v1041 = vunpack.c.l.b16 %v689
    %v1042 = vunpack.c.h.b16 %v689
    %v1043 = vunpack.c.l.b16 %v690
    %v1044 = vunpack.c.h.b16 %v690
    %v1045 = vunpack.c.l.b16 %v691
    %v1046 = vunpack.c.h.b16 %v691
    %v1047 = vunpack.c.l.b16 %v692
    %v1048 = vunpack.c.h.b16 %v692
    %v1049 = vunpack.c.l.b16 %v693
    %v1050 = vunpack.c.h.b16 %v693
    %v1051 = vunpack.c.l.b16 %v694
    %v1052 = vunpack.c.h.b16 %v694
    %v1053 = vunpack.c.l.b16 %v695
    %v1054 = vunpack.c.h.b16 %v695
    %v1055 = vunpack.c.l.b16 %v696
    %v1056 = vunpack.c.h.b16 %v696
    %v1057 = vunpack.c.l.b16 %v697
    %v1058 = vunpack.c.h.b16 %v697
    %v1059 = vunpack.c.l.b16 %v698
    %v1060 = vunpack.c.h.b16 %v698
    %v1061 = vunpack.c.l.b16 %v699
    %v1062 = vunpack.c.h.b16 %v699
    %v1063 = vunpack.c.l.b16 %v700
    %v1064 = vunpack.c.h.b16 %v700
    %v1065 = vunpack.c.l.b16 %v701
    %v1066 = vunpack.c.h.b16 %v701
    %v1067 = vunpack.c.l.b16 %v702
    %v1068 = vunpack.c.h.b16 %v702
    %v1069 = vunpack.c.l.b16 %v703
    %v1070 = vunpack.c.h.b16 %v703
    %v1071 = vunpack.c.l.b16 %v704
    %v1072 = vunpack.c.h.b16 %v704
    %v1073 = vunpack.c.l.b16 %v705
    %v1074 = vunpack.c.h.b16 %v705
    %v1075 = vunpack.c.l.b16 %v706
    %v1076 = vunpack.c.h.b16 %v706
    %v1077 = vunpack.c.l.b16 %v707
    %v1078 = vunpack.c.h.b16 %v707
    %v1079 = vunpack.c.l.b16 %v708
    %v1080 = vunpack.c.h.b16 %v708
    %v1081 = vunpack.c.l.b16 %v709
    %v1082 = vunpack.c.h.b16 %v709
    %v1083 = vunpack.c.l.b16 %v710
    %v1084 = vunpack.c.h.b16 %v710
    %v1085 = vunpack.c.l.b16 %v711
    %v1086 = vunpack.c.h.b16 %v711
    %v1087 = vunpack.c.l.b16 %v712
    %v1088 = vunpack.c.h.b16 %v712
    %v1089 = vunpack.c.l.b16 %v713
    %v1090 = vunpack.c.h.b16 %v713
    %v1091 = vunpack.c.l.b16 %v714
    %v1092 = vunpack.c.h.b16 %v714
    %v1093 = vunpack.c.l.b16 %v715
    %v1094 = vunpack.c.h.b16 %v715
    %v1095 = vunpack.c.l.b16 %v716
    %v1096 = vunpack.c.h.b16 %v716
    %v1097 = vunpack.c.l.b16 %v717
    %v1098 = vunpack.c.h.b16 %v717
    %v1099 = vunpack.c.l.b16 %v718
    %v1100 = vunpack.c.h.b16 %v718
    %v1101 = vunpack.c.l.b16 %v719
    %v1102 = vunpack.c.h.b16 %v719
    %v1103 = vunpack.c.l.b16 %v720
    %v1104 = vunpack.c.h.b16 %v720
    %v1105 = vunpack.c.l.b16 %v721
    %v1106 = vunpack.c.h.b16 %v721
    %v1107 = vunpack.c.l.b16 %v722
    %v1108 = vunpack.c.h.b16 %v722
    %v1109 = vunpack.c.l.b16 %v723
    %v1110 = vunpack.c.h.b16 %v723
    %v1111 = vunpack.c.l.b16 %v724
    %v1112 = vunpack.c.h.b16 %v724
    %v1113 = vunpack.c.l.b16 %v725
    %v1114 = vunpack.c.h.b16 %v725
    %v1115 = vunpack.c.l.b16 %v726
    %v1116 = vunpack.c.h.b16 %v726
    %v1117 = vunpack.c.l.b16 %v727
    %v1118 = vunpack.c.h.b16 %v727
    %v1119 = vunpack.c.l.b16 %v728
    %v1120 = vunpack.c.h.b16 %v728
    %v1121 = vunpack.c.l.b16 %v729
    %v1122 = vunpack.c.h.b16 %v729
    %v1123 = vunpack.c.l.b16 %v730
    %v1124 = vunpack.c.h.b16 %v730
    %v1125 = vunpack.c.l.b16 %v731
    %v1126 = vunpack.c.h.b16 %v731
    %v1127 = vunpack.c.l.b16 %v732
    %v1128 = vunpack.c.h.b16 %v732
    %v1129 = vunpack.c.l.b16 %v733
    %v1130 = vunpack.c.h.b16 %v733
    %v1131 = vunpack.c.l.b16 %v734
    %v1132 = vunpack.c.h.b16 %v734
    %v1133 = vunpack.c.l.b16 %v735
    %v1134 = vunpack.c.h.b16 %v735
    %v1135 = vunpack.c.l.b16 %v736
    %v1136 = vunpack.c.h.b16 %v736
    %v1137 = vunpack.c.l.b16 %v737
    %v1138 = vunpack.c.h.b16 %v737
    %v1139 = vunpack.c.l.b16 %v738
    %v1140 = vunpack.c.h.b16 %v738
    %v1141 = vunpack.c.l.b16 %v739
    %v1142 = vunpack.c.h.b16 %v739
    %v1143 = vunpack.c.l.b16 %v740
    %v1144 = vunpack.c.h.b16 %v740
    %v1145 = vunpack.c.l.b16 %v741
    %v1146 = vunpack.c.h.b16 %v741
    %v1147 = vunpack.c.l.b16 %v742
    %v1148 = vunpack.c.h.b16 %v742
    %v1149 = vpack.c.b16 %v897, %v893
    %v1150 = vpack.c.b16 %v898, %v894
    %v1151 = vpack.c.b16 %v899, %v895
    %v1152 = vpack.c.b16 %v900, %v896
    %v1153 = vpack.c.b16 %v905, %v901
    %v1154 = vpack.c.b16 %v906, %v902
    %v1155 = vpack.c.b16 %v907, %v903
    %v1156 = vpack.c.b16 %v908, %v904
    %v1157 = vpack.c.b16 %v913, %v909
    %v1158 = vpack.c.b16 %v914, %v910
    %v1159 = vpack.c.b16 %v915, %v911
    %v1160 = vpack.c.b16 %v916, %v912
    %v1161 = vpack.c.b16 %v921, %v917
    %v1162 = vpack.c.b16 %v922, %v918
    %v1163 = vpack.c.b16 %v923, %v919
    %v1164 = vpack.c.b16 %v924, %v920
    %v1165 = vpack.c.b16 %v929, %v925
    %v1166 = vpack.c.b16 %v930, %v926
    %v1167 = vpack.c.b16 %v931, %v927
    %v1168 = vpack.c.b16 %v932, %v928
    %v1169 = vpack.c.b16 %v937, %v933
    %v1170 = vpack.c.b16 %v938, %v934
    %v1171 = vpack.c.b16 %v939, %v935
    %v1172 = vpack.c.b16 %v940, %v936
    %v1173 = vpack.c.b16 %v945, %v941
    %v1174 = vpack.c.b16 %v946, %v942
    %v1175 = vpack.c.b16 %v947, %v943
    %v1176 = vpack.c.b16 %v948, %v944
    %v1177 = vpack.c.b16 %v953, %v949
    %v1178 = vpack.c.b16 %v954, %v950
    %v1179 = vpack.c.b16 %v955, %v951
    %v1180 = vpack.c.b16 %v956, %v952
    %v1181 = vpack.c.b16 %v961, %v957
    %v1182 = vpack.c.b16 %v962, %v958
    %v1183 = vpack.c.b16 %v963, %v959
    %v1184 = vpack.c.b16 %v964, %v960
    %v1185 = vpack.c.b16 %v969, %v965
    %v1186 = vpack.c.b16 %v970, %v966
    %v1187 = vpack.c.b16 %v971, %v967
    %v1188 = vpack.c.b16 %v972, %v968
    %v1189 = vpack.c.b16 %v977, %v973
    %v1190 = vpack.c.b16 %v978, %v974
    %v1191 = vpack.c.b16 %v979, %v975
    %v1192 = vpack.c.b16 %v980, %v976
    %v1193 = vpack.c.b16 %v985, %v981
    %v1194 = vpack.c.b16 %v986, %v982
    %v1195 = vpack.c.b16 %v987, %v983
    %v1196 = vpack.c.b16 %v988, %v984
    %v1197 = vpack.c.b16 %v993, %v989
    %v1198 = vpack.c.b16 %v994, %v990
    %v1199 = vpack.c.b16 %v995, %v991
    %v1200 = vpack.c.b16 %v996, %v992
    %v1201 = vpack.c.b16 %v1001, %v997
    %v1202 = vpack.c.b16 %v1002, %v998
    %v1203 = vpack.c.b16 %v1003, %v999
    %v1204 = vpack.c.b16 %v1004, %v1000
    %v1205 = vpack.c.b16 %v1009, %v1005
    %v1206 = vpack.c.b16 %v1010, %v1006
    %v1207 = vpack.c.b16 %v1011, %v1007
    %v1208 = vpack.c.b16 %v1012, %v1008
    %v1209 = vpack.c.b16 %v1017, %v1013
    %v1210 = vpack.c.b16 %v1018, %v1014
    %v1211 = vpack.c.b16 %v1019, %v1015
    %v1212 = vpack.c.b16 %v1020, %v1016
    %v1213 = vpack.c.b16 %v1025, %v1021
    %v1214 = vpack.c.b16 %v1026, %v1022
    %v1215 = vpack.c.b16 %v1027, %v1023
    %v1216 = vpack.c.b16 %v1028, %v1024
    %v1217 = vpack.c.b16 %v1033, %v1029
    %v1218 = vpack.c.b16 %v1034, %v1030
    %v1219 = vpack.c.b16 %v1035, %v1031
    %v1220 = vpack.c.b16 %v1036, %v1032
    %v1221 = vpack.c.b16 %v1041, %v1037
    %v1222 = vpack.c.b16 %v1042, %v1038
    %v1223 = vpack.c.b16 %v1043, %v1039
    %v1224 = vpack.c.b16 %v1044, %v1040
    %v1225 = vpack.c.b16 %v1049, %v1045
    %v1226 = vpack.c.b16 %v1050, %v1046
    %v1227 = vpack.c.b16 %v1051, %v1047
    %v1228 = vpack.c.b16 %v1052, %v1048
    %v1229 = vpack.c.b16 %v1057, %v1053
    %v1230 = vpack.c.b16 %v1058, %v1054
    %v1231 = vpack.c.b16 %v1059, %v1055
    %v1232 = vpack.c.b16 %v1060, %v1056
    %v1233 = vpack.c.b16 %v1065, %v1061
    %v1234 = vpack.c.b16 %v1066, %v1062
    %v1235 = vpack.c.b16 %v1067, %v1063
    %v1236 = vpack.c.b16 %v1068, %v1064
    %v1237 = vpack.c.b16 %v1073, %v1069
    %v1238 = vpack.c.b16 %v1074, %v1070
    %v1239 = vpack.c.b16 %v1075, %v1071
    %v1240 = vpack.c.b16 %v1076, %v1072
    %v1241 = vpack.c.b16 %v1081, %v1077
    %v1242 = vpack.c.b16 %v1082, %v1078
    %v1243 = vpack.c.b16 %v1083, %v1079
    %v1244 = vpack.c.b16 %v1084, %v1080
    %v1245 = vpack.c.b16 %v1089, %v1085
    %v1246 = vpack.c.b16 %v1090, %v1086
    %v1247 = vpack.c.b16 %v1091, %v1087
    %v1248 = vpack.c.b16 %v1092, %v1088
    %v1249 = vpack.c.b16 %v1097, %v1093
    %v1250 = vpack.c.b16 %v1098, %v1094
    %v1251 = vpack.c.b16 %v1099, %v1095
    %v1252 = vpack.c.b16 %v1100, %v1096
    %v1253 = vpack.c.b16 %v1105, %v1101
    %v1254 = vpack.c.b16 %v1106, %v1102
    %v1255 = vpack.c.b16 %v1107, %v1103
    %v1256 = vpack.c.b16 %v1108, %v1104
    %v1257 = vpack.c.b16 %v1113, %v1109
    %v1258 = vpack.c.b16 %v1114, %v1110
    %v1259 = vpack.c.b16 %v1115, %v1111
    %v1260 = vpack.c.b16 %v1116, %v1112
    %v1261 = vpack.c.b16 %v1121, %v1117
    %v1262 = vpack.c.b16 %v1122, %v1118
    %v1263 = vpack.c.b16 %v1123, %v1119
    %v1264 = vpack.c.b16 %v1124, %v1120
    %v1265 = vpack.c.b16 %v1129, %v1125
    %v1266 = vpack.c.b16 %v1130, %v1126
    %v1267 = vpack.c.b16 %v1131, %v1127
    %v1268 = vpack.c.b16 %v1132, %v1128
    %v1269 = vpack.c.b16 %v1137, %v1133
    %v1270 = vpack.c.b16 %v1138, %v1134
    %v1271 = vpack.c.b16 %v1139, %v1135
    %v1272 = vpack.c.b16 %v1140, %v1136
    %v1273 = vpack.c.b16 %v1145, %v1141
    %v1274 = vpack.c.b16 %v1146, %v1142
    %v1275 = vpack.c.b16 %v1147, %v1143
    %v1276 = vpack.c.b16 %v1148, %v1144
    %1405 = vmatprep.subr.bf16.mxu0 %v1150
    %1406 = vmatpush1.bf16.msra.mxu0 %v1149
    %1407 = vmatprep.subr.bf16.mxu0 %v1154
    %1408 = vmatpush1.bf16.msra.mxu0 %v1153
    %1409 = vmatprep.subr.bf16.mxu0 %v1158
    %1410 = vmatpush1.bf16.msra.mxu0 %v1157
    %1411 = vmatprep.subr.bf16.mxu0 %v1162
    %1412 = vmatpush1.bf16.msra.mxu0 %v1161
    %1413 = vmatprep.subr.bf16.mxu0 %v1166
    %1414 = vmatpush1.bf16.msra.mxu0 %v1165
    %1415 = vmatprep.subr.bf16.mxu0 %v1170
    %1416 = vmatpush1.bf16.msra.mxu0 %v1169
    %1417 = vmatprep.subr.bf16.mxu0 %v1174
    %1418 = vmatpush1.bf16.msra.mxu0 %v1173
    %1419 = vmatprep.subr.bf16.mxu0 %v1178
    %1420 = vmatpush1.bf16.msra.mxu0 %v1177
    %1421 = vmatprep.subr.bf16.mxu0 %v1182
    %1422 = vmatpush1.bf16.msra.mxu0 %v1181
    %1423 = vmatprep.subr.bf16.mxu0 %v1186
    %1424 = vmatpush1.bf16.msra.mxu0 %v1185
    %1425 = vmatprep.subr.bf16.mxu0 %v1190
    %1426 = vmatpush1.bf16.msra.mxu0 %v1189
    %1427 = vmatprep.subr.bf16.mxu0 %v1194
    %1428 = vmatpush1.bf16.msra.mxu0 %v1193
    %1429 = vmatprep.subr.bf16.mxu0 %v1198
    %1430 = vmatpush1.bf16.msra.mxu0 %v1197
    %1431 = vmatprep.subr.bf16.mxu0 %v1202
    %1432 = vmatpush1.bf16.msra.mxu0 %v1201
    %1433 = vmatprep.subr.bf16.mxu0 %v1206
    %1434 = vmatpush1.bf16.msra.mxu0 %v1205
    %1435 = vmatprep.subr.bf16.mxu0 %v1210
    %1436 = vmatpush1.bf16.msra.mxu0 %v1209
    %1437 = vmatprep.mubr.bf16.mxu0 %v612
    %1438 = vmatmul.mubr.bf16.gmra.mrb[0].mxu0 %v611
    %v1439 = vpop.f32.mrb[0].mxu0
    %v1440 = vadd.f32 %v748, %v1439
    %v1441 = vpop.f32.mrb[0].mxu0
    %v1442 = vadd.f32 %v752, %v1441
    %v1443 = vpop.f32.mrb[0].mxu0
    %v1444 = vpop.f32.mrb[0].mxu0
    %1445 = vdwg.mxu0
    %1446 = vmatprep.subr.bf16.mxu0 %v1214
    %1447 = vmatpush1.bf16.msra.mxu0 %v1213
    %1448 = vmatprep.subr.bf16.mxu0 %v1218
    %1449 = vmatpush1.bf16.msra.mxu0 %v1217
    %1450 = vmatprep.subr.bf16.mxu0 %v1222
    %1451 = vmatpush1.bf16.msra.mxu0 %v1221
    %1452 = vmatprep.subr.bf16.mxu0 %v1226
    %1453 = vmatpush1.bf16.msra.mxu0 %v1225
    %1454 = vmatprep.subr.bf16.mxu0 %v1230
    %1455 = vmatpush1.bf16.msra.mxu0 %v1229
    %1456 = vmatprep.subr.bf16.mxu0 %v1234
    %1457 = vmatpush1.bf16.msra.mxu0 %v1233
    %1458 = vmatprep.subr.bf16.mxu0 %v1238
    %1459 = vmatpush1.bf16.msra.mxu0 %v1237
    %1460 = vmatprep.subr.bf16.mxu0 %v1242
    %1461 = vmatpush1.bf16.msra.mxu0 %v1241
    %1462 = vmatprep.subr.bf16.mxu0 %v1246
    %1463 = vmatpush1.bf16.msra.mxu0 %v1245
    %1464 = vmatprep.subr.bf16.mxu0 %v1250
    %1465 = vmatpush1.bf16.msra.mxu0 %v1249
    %1466 = vmatprep.subr.bf16.mxu0 %v1254
    %1467 = vmatpush1.bf16.msra.mxu0 %v1253
    %1468 = vmatprep.subr.bf16.mxu0 %v1258
    %1469 = vmatpush1.bf16.msra.mxu0 %v1257
    %1470 = vmatprep.subr.bf16.mxu0 %v1262
    %1471 = vmatpush1.bf16.msra.mxu0 %v1261
    %1472 = vmatprep.subr.bf16.mxu0 %v1266
    %1473 = vmatpush1.bf16.msra.mxu0 %v1265
    %1474 = vmatprep.subr.bf16.mxu0 %v1270
    %1475 = vmatpush1.bf16.msra.mxu0 %v1269
    %1476 = vmatprep.subr.bf16.mxu0 %v1274
    %1477 = vmatpush1.bf16.msra.mxu0 %v1273
    %1478 = vmatprep.mubr.bf16.mxu0 %v614
    %1479 = vmatmul.mubr.bf16.gmra.mrb[0].mxu0 %v613
    %v1480 = vpop.f32.mrb[0].mxu0
    %v1481 = vadd.f32 %v1440, %v1480
    %v1482 = vpop.f32.mrb[0].mxu0
    %v1483 = vadd.f32 %v1442, %v1482
    %v1484 = vpop.f32.mrb[0].mxu0
    %v1485 = vpop.f32.mrb[0].mxu0
    %1486 = vdwg.mxu0
    %1487 = vmatprep.subr.bf16.mxu0 %v1152
    %1488 = vmatpush1.bf16.msra.mxu0 %v1151
    %1489 = vmatprep.subr.bf16.mxu0 %v1156
    %1490 = vmatpush1.bf16.msra.mxu0 %v1155
    %1491 = vmatprep.subr.bf16.mxu0 %v1160
    %1492 = vmatpush1.bf16.msra.mxu0 %v1159
    %1493 = vmatprep.subr.bf16.mxu0 %v1164
    %1494 = vmatpush1.bf16.msra.mxu0 %v1163
    %1495 = vmatprep.subr.bf16.mxu0 %v1168
    %1496 = vmatpush1.bf16.msra.mxu0 %v1167
    %1497 = vmatprep.subr.bf16.mxu0 %v1172
    %1498 = vmatpush1.bf16.msra.mxu0 %v1171
    %1499 = vmatprep.subr.bf16.mxu0 %v1176
    %1500 = vmatpush1.bf16.msra.mxu0 %v1175
    %1501 = vmatprep.subr.bf16.mxu0 %v1180
    %1502 = vmatpush1.bf16.msra.mxu0 %v1179
    %1503 = vmatprep.subr.bf16.mxu0 %v1184
    %1504 = vmatpush1.bf16.msra.mxu0 %v1183
    %1505 = vmatprep.subr.bf16.mxu0 %v1188
    %1506 = vmatpush1.bf16.msra.mxu0 %v1187
    %1507 = vmatprep.subr.bf16.mxu0 %v1192
    %1508 = vmatpush1.bf16.msra.mxu0 %v1191
    %1509 = vmatprep.subr.bf16.mxu0 %v1196
    %1510 = vmatpush1.bf16.msra.mxu0 %v1195
    %1511 = vmatprep.subr.bf16.mxu0 %v1200
    %1512 = vmatpush1.bf16.msra.mxu0 %v1199
    %1513 = vmatprep.subr.bf16.mxu0 %v1204
    %1514 = vmatpush1.bf16.msra.mxu0 %v1203
    %1515 = vmatprep.subr.bf16.mxu0 %v1208
    %1516 = vmatpush1.bf16.msra.mxu0 %v1207
    %1517 = vmatprep.subr.bf16.mxu0 %v1212
    %1518 = vmatpush1.bf16.msra.mxu0 %v1211
    %1519 = vmatprep.mubr.bf16.mxu0 %v612
    %1520 = vmatmul.mubr.bf16.gmra.mrb[0].mxu0 %v611
    %v1521 = vpop.f32.mrb[0].mxu0
    %v1522 = vadd.f32 %v756, %v1521
    %v1523 = vpop.f32.mrb[0].mxu0
    %v1524 = vadd.f32 %v760, %v1523
    %v1525 = vpop.f32.mrb[0].mxu0
    %v1526 = vpop.f32.mrb[0].mxu0
    %1527 = vdwg.mxu0
    %1528 = vmatprep.subr.bf16.mxu0 %v1216
    %1529 = vmatpush1.bf16.msra.mxu0 %v1215
    %1530 = vmatprep.subr.bf16.mxu0 %v1220
    %1531 = vmatpush1.bf16.msra.mxu0 %v1219
    %1532 = vmatprep.subr.bf16.mxu0 %v1224
    %1533 = vmatpush1.bf16.msra.mxu0 %v1223
    %1534 = vmatprep.subr.bf16.mxu0 %v1228
    %1535 = vmatpush1.bf16.msra.mxu0 %v1227
    %1536 = vmatprep.subr.bf16.mxu0 %v1232
    %1537 = vmatpush1.bf16.msra.mxu0 %v1231
    %1538 = vmatprep.subr.bf16.mxu0 %v1236
    %1539 = vmatpush1.bf16.msra.mxu0 %v1235
    %1540 = vmatprep.subr.bf16.mxu0 %v1240
    %1541 = vmatpush1.bf16.msra.mxu0 %v1239
    %1542 = vmatprep.subr.bf16.mxu0 %v1244
    %1543 = vmatpush1.bf16.msra.mxu0 %v1243
    %1544 = vmatprep.subr.bf16.mxu0 %v1248
    %1545 = vmatpush1.bf16.msra.mxu0 %v1247
    %1546 = vmatprep.subr.bf16.mxu0 %v1252
    %1547 = vmatpush1.bf16.msra.mxu0 %v1251
    %1548 = vmatprep.subr.bf16.mxu0 %v1256
    %1549 = vmatpush1.bf16.msra.mxu0 %v1255
    %1550 = vmatprep.subr.bf16.mxu0 %v1260
    %1551 = vmatpush1.bf16.msra.mxu0 %v1259
    %1552 = vmatprep.subr.bf16.mxu0 %v1264
    %1553 = vmatpush1.bf16.msra.mxu0 %v1263
    %1554 = vmatprep.subr.bf16.mxu0 %v1268
    %1555 = vmatpush1.bf16.msra.mxu0 %v1267
    %1556 = vmatprep.subr.bf16.mxu0 %v1272
    %1557 = vmatpush1.bf16.msra.mxu0 %v1271
    %1558 = vmatprep.subr.bf16.mxu0 %v1276
    %1559 = vmatpush1.bf16.msra.mxu0 %v1275
    %1560 = vmatprep.mubr.bf16.mxu0 %v614
    %1561 = vmatmul.mubr.bf16.gmra.mrb[0].mxu0 %v613
    %v1562 = vpop.f32.mrb[0].mxu0
    %v1563 = vadd.f32 %v1522, %v1562
    %v1564 = vpop.f32.mrb[0].mxu0
    %v1565 = vadd.f32 %v1524, %v1564
    %v1566 = vpop.f32.mrb[0].mxu0
    %v1567 = vpop.f32.mrb[0].mxu0
    %1568 = vdwg.mxu0
    %v1569 = vmax.f32 %v1481, 0.0
    %v1570 = vmax.f32 %v1483, 0.0
    %v1571 = vmax.f32 %v1563, 0.0
    %v1572 = vmax.f32 %v1565, 0.0
    %v1573 = vpack.c.bf16 %v1569, %v1569
    %v1574 = vpack.c.bf16 %v1570, %v1570
    %v1575 = vpack.c.bf16 %v1571, %v1571
    %v1576 = vpack.c.bf16 %v1572, %v1572
    %v1577 = vld [vmem:[#allocation11] sm:$0xf]
    %v1578 = vld [vmem:[#allocation11 + $0x4] sm:$0xf]
    %v1579 = vld [vmem:[#allocation11 + $0x8] sm:$0xf]
    %v1580 = vld [vmem:[#allocation11 + $0xc] sm:$0xf]
    %v1581 = vld [vmem:[#allocation11 + $0x10] sm:$0xf]
    %v1582 = vld [vmem:[#allocation11 + $0x14] sm:$0xf]
    %v1583 = vld [vmem:[#allocation11 + $0x18] sm:$0xf]
    %v1584 = vld [vmem:[#allocation11 + $0x1c] sm:$0xf]
    %v1585 = vld [vmem:[#allocation11 + $0x20] sm:$0xf]
    %v1586 = vld [vmem:[#allocation11 + $0x24] sm:$0xf]
    %v1587 = vld [vmem:[#allocation11 + $0x28] sm:$0xf]
    %v1588 = vld [vmem:[#allocation11 + $0x2c] sm:$0xf]
    %v1589 = vld [vmem:[#allocation11 + $0x30] sm:$0xf]
    %v1590 = vld [vmem:[#allocation11 + $0x34] sm:$0xf]
    %v1591 = vld [vmem:[#allocation11 + $0x38] sm:$0xf]
    %v1592 = vld [vmem:[#allocation11 + $0x3c] sm:$0xf]
    %v1593 = vld [vmem:[#allocation11 + $0x40] sm:$0xf]
    %v1594 = vld [vmem:[#allocation11 + $0x44] sm:$0xf]
    %v1595 = vld [vmem:[#allocation11 + $0x48] sm:$0xf]
    %v1596 = vld [vmem:[#allocation11 + $0x4c] sm:$0xf]
    %v1597 = vld [vmem:[#allocation11 + $0x50] sm:$0xf]
    %v1598 = vld [vmem:[#allocation11 + $0x54] sm:$0xf]
    %v1599 = vld [vmem:[#allocation11 + $0x58] sm:$0xf]
    %v1600 = vld [vmem:[#allocation11 + $0x5c] sm:$0xf]
    %v1601 = vld [vmem:[#allocation11 + $0x60] sm:$0xf]
    %v1602 = vld [vmem:[#allocation11 + $0x64] sm:$0xf]
    %v1603 = vld [vmem:[#allocation11 + $0x68] sm:$0xf]
    %v1604 = vld [vmem:[#allocation11 + $0x6c] sm:$0xf]
    %v1605 = vld [vmem:[#allocation11 + $0x70] sm:$0xf]
    %v1606 = vld [vmem:[#allocation11 + $0x74] sm:$0xf]
    %v1607 = vld [vmem:[#allocation11 + $0x78] sm:$0xf]
    %v1608 = vld [vmem:[#allocation11 + $0x7c] sm:$0xf]
    %v1609 = vld [vmem:[#allocation11 + $0x80] sm:$0xf]
    %v1610 = vld [vmem:[#allocation11 + $0x84] sm:$0xf]
    %v1611 = vld [vmem:[#allocation11 + $0x88] sm:$0xf]
    %v1612 = vld [vmem:[#allocation11 + $0x8c] sm:$0xf]
    %v1613 = vld [vmem:[#allocation11 + $0x90] sm:$0xf]
    %v1614 = vld [vmem:[#allocation11 + $0x94] sm:$0xf]
    %v1615 = vld [vmem:[#allocation11 + $0x98] sm:$0xf]
    %v1616 = vld [vmem:[#allocation11 + $0x9c] sm:$0xf]
    %v1617 = vld [vmem:[#allocation11 + $0xa0] sm:$0xf]
    %v1618 = vld [vmem:[#allocation11 + $0xa4] sm:$0xf]
    %v1619 = vld [vmem:[#allocation11 + $0xa8] sm:$0xf]
    %v1620 = vld [vmem:[#allocation11 + $0xac] sm:$0xf]
    %v1621 = vld [vmem:[#allocation11 + $0xb0] sm:$0xf]
    %v1622 = vld [vmem:[#allocation11 + $0xb4] sm:$0xf]
    %v1623 = vld [vmem:[#allocation11 + $0xb8] sm:$0xf]
    %v1624 = vld [vmem:[#allocation11 + $0xbc] sm:$0xf]
    %v1625 = vld [vmem:[#allocation11 + $0xc0] sm:$0xf]
    %v1626 = vld [vmem:[#allocation11 + $0xc4] sm:$0xf]
    %v1627 = vld [vmem:[#allocation11 + $0xc8] sm:$0xf]
    %v1628 = vld [vmem:[#allocation11 + $0xcc] sm:$0xf]
    %v1629 = vld [vmem:[#allocation11 + $0xd0] sm:$0xf]
    %v1630 = vld [vmem:[#allocation11 + $0xd4] sm:$0xf]
    %v1631 = vld [vmem:[#allocation11 + $0xd8] sm:$0xf]
    %v1632 = vld [vmem:[#allocation11 + $0xdc] sm:$0xf]
    %v1633 = vld [vmem:[#allocation11 + $0xe0] sm:$0xf]
    %v1634 = vld [vmem:[#allocation11 + $0xe4] sm:$0xf]
    %v1635 = vld [vmem:[#allocation11 + $0xe8] sm:$0xf]
    %v1636 = vld [vmem:[#allocation11 + $0xec] sm:$0xf]
    %v1637 = vld [vmem:[#allocation11 + $0xf0] sm:$0xf]
    %v1638 = vld [vmem:[#allocation11 + $0xf4] sm:$0xf]
    %v1639 = vld [vmem:[#allocation11 + $0xf8] sm:$0xf]
    %v1640 = vld [vmem:[#allocation11 + $0xfc] sm:$0xf]
    %v1641 = vld [vmem:[#allocation13] sm:$0x1]
    %v1643 = vlaneseq
    %v1644 = vshrl.u32 %v1643, 7
    %v1645 = vsub.s32 0, %v1644
    %v1646 = vrot.slane %v1641, %v1645
    %v1712 = vunpack.c.l.b16 %v1577
    %v1713 = vunpack.c.l.b16 %v1578
    %v1714 = vunpack.c.l.b16 %v1579
    %v1715 = vunpack.c.l.b16 %v1580
    %v1716 = vunpack.c.l.b16 %v1581
    %v1717 = vunpack.c.l.b16 %v1582
    %v1718 = vunpack.c.l.b16 %v1583
    %v1719 = vunpack.c.l.b16 %v1584
    %v1720 = vunpack.c.l.b16 %v1585
    %v1721 = vunpack.c.l.b16 %v1586
    %v1722 = vunpack.c.l.b16 %v1587
    %v1723 = vunpack.c.l.b16 %v1588
    %v1724 = vunpack.c.l.b16 %v1589
    %v1725 = vunpack.c.l.b16 %v1590
    %v1726 = vunpack.c.l.b16 %v1591
    %v1727 = vunpack.c.l.b16 %v1592
    %v1728 = vunpack.c.l.b16 %v1593
    %v1729 = vunpack.c.l.b16 %v1594
    %v1730 = vunpack.c.l.b16 %v1595
    %v1731 = vunpack.c.l.b16 %v1596
    %v1732 = vunpack.c.l.b16 %v1597
    %v1733 = vunpack.c.l.b16 %v1598
    %v1734 = vunpack.c.l.b16 %v1599
    %v1735 = vunpack.c.l.b16 %v1600
    %v1736 = vunpack.c.l.b16 %v1601
    %v1737 = vunpack.c.l.b16 %v1602
    %v1738 = vunpack.c.l.b16 %v1603
    %v1739 = vunpack.c.l.b16 %v1604
    %v1740 = vunpack.c.l.b16 %v1605
    %v1741 = vunpack.c.l.b16 %v1606
    %v1742 = vunpack.c.l.b16 %v1607
    %v1743 = vunpack.c.l.b16 %v1608
    %v1744 = vunpack.c.l.b16 %v1609
    %v1745 = vunpack.c.l.b16 %v1610
    %v1746 = vunpack.c.l.b16 %v1611
    %v1747 = vunpack.c.l.b16 %v1612
    %v1748 = vunpack.c.l.b16 %v1613
    %v1749 = vunpack.c.l.b16 %v1614
    %v1750 = vunpack.c.l.b16 %v1615
    %v1751 = vunpack.c.l.b16 %v1616
    %v1752 = vunpack.c.l.b16 %v1617
    %v1753 = vunpack.c.l.b16 %v1618
    %v1754 = vunpack.c.l.b16 %v1619
    %v1755 = vunpack.c.l.b16 %v1620
    %v1756 = vunpack.c.l.b16 %v1621
    %v1757 = vunpack.c.l.b16 %v1622
    %v1758 = vunpack.c.l.b16 %v1623
    %v1759 = vunpack.c.l.b16 %v1624
    %v1760 = vunpack.c.l.b16 %v1625
    %v1761 = vunpack.c.l.b16 %v1626
    %v1762 = vunpack.c.l.b16 %v1627
    %v1763 = vunpack.c.l.b16 %v1628
    %v1764 = vunpack.c.l.b16 %v1629
    %v1765 = vunpack.c.l.b16 %v1630
    %v1766 = vunpack.c.l.b16 %v1631
    %v1767 = vunpack.c.l.b16 %v1632
    %v1768 = vunpack.c.l.b16 %v1633
    %v1769 = vunpack.c.l.b16 %v1634
    %v1770 = vunpack.c.l.b16 %v1635
    %v1771 = vunpack.c.l.b16 %v1636
    %v1772 = vunpack.c.l.b16 %v1637
    %v1773 = vunpack.c.l.b16 %v1638
    %v1774 = vunpack.c.l.b16 %v1639
    %v1775 = vunpack.c.l.b16 %v1640
    %v1776 = vpack.c.b16 %v1713, %v1712
    %v1777 = vpack.c.b16 %v1715, %v1714
    %v1778 = vpack.c.b16 %v1717, %v1716
    %v1779 = vpack.c.b16 %v1719, %v1718
    %v1780 = vpack.c.b16 %v1721, %v1720
    %v1781 = vpack.c.b16 %v1723, %v1722
    %v1782 = vpack.c.b16 %v1725, %v1724
    %v1783 = vpack.c.b16 %v1727, %v1726
    %v1784 = vpack.c.b16 %v1729, %v1728
    %v1785 = vpack.c.b16 %v1731, %v1730
    %v1786 = vpack.c.b16 %v1733, %v1732
    %v1787 = vpack.c.b16 %v1735, %v1734
    %v1788 = vpack.c.b16 %v1737, %v1736
    %v1789 = vpack.c.b16 %v1739, %v1738
    %v1790 = vpack.c.b16 %v1741, %v1740
    %v1791 = vpack.c.b16 %v1743, %v1742
    %v1792 = vpack.c.b16 %v1745, %v1744
    %v1793 = vpack.c.b16 %v1747, %v1746
    %v1794 = vpack.c.b16 %v1749, %v1748
    %v1795 = vpack.c.b16 %v1751, %v1750
    %v1796 = vpack.c.b16 %v1753, %v1752
    %v1797 = vpack.c.b16 %v1755, %v1754
    %v1798 = vpack.c.b16 %v1757, %v1756
    %v1799 = vpack.c.b16 %v1759, %v1758
    %v1800 = vpack.c.b16 %v1761, %v1760
    %v1801 = vpack.c.b16 %v1763, %v1762
    %v1802 = vpack.c.b16 %v1765, %v1764
    %v1803 = vpack.c.b16 %v1767, %v1766
    %v1804 = vpack.c.b16 %v1769, %v1768
    %v1805 = vpack.c.b16 %v1771, %v1770
    %v1806 = vpack.c.b16 %v1773, %v1772
    %v1807 = vpack.c.b16 %v1775, %v1774
    %1840 = vmatprep.subr.bf16.mxu0 0
    %1841 = vmatpush1.bf16.msra.mxu0 %v1776
    %1842 = vmatprep.subr.bf16.mxu0 0
    %1843 = vmatpush1.bf16.msra.mxu0 %v1777
    %1844 = vmatprep.subr.bf16.mxu0 0
    %1845 = vmatpush1.bf16.msra.mxu0 %v1778
    %1846 = vmatprep.subr.bf16.mxu0 0
    %1847 = vmatpush1.bf16.msra.mxu0 %v1779
    %1848 = vmatprep.subr.bf16.mxu0 0
    %1849 = vmatpush1.bf16.msra.mxu0 %v1780
    %1850 = vmatprep.subr.bf16.mxu0 0
    %1851 = vmatpush1.bf16.msra.mxu0 %v1781
    %1852 = vmatprep.subr.bf16.mxu0 0
    %1853 = vmatpush1.bf16.msra.mxu0 %v1782
    %1854 = vmatprep.subr.bf16.mxu0 0
    %1855 = vmatpush1.bf16.msra.mxu0 %v1783
    %1856 = vmatprep.subr.bf16.mxu0 0
    %1857 = vmatpush1.bf16.msra.mxu0 %v1784
    %1858 = vmatprep.subr.bf16.mxu0 0
    %1859 = vmatpush1.bf16.msra.mxu0 %v1785
    %1860 = vmatprep.subr.bf16.mxu0 0
    %1861 = vmatpush1.bf16.msra.mxu0 %v1786
    %1862 = vmatprep.subr.bf16.mxu0 0
    %1863 = vmatpush1.bf16.msra.mxu0 %v1787
    %1864 = vmatprep.subr.bf16.mxu0 0
    %1865 = vmatpush1.bf16.msra.mxu0 %v1788
    %1866 = vmatprep.subr.bf16.mxu0 0
    %1867 = vmatpush1.bf16.msra.mxu0 %v1789
    %1868 = vmatprep.subr.bf16.mxu0 0
    %1869 = vmatpush1.bf16.msra.mxu0 %v1790
    %1870 = vmatprep.subr.bf16.mxu0 0
    %1871 = vmatpush1.bf16.msra.mxu0 %v1791
    %1872 = vmatprep.mubr.bf16.mxu0 %v1574
    %1873 = vmatmul.mubr.bf16.gmra.mrb[0].mxu0 %v1573
    %v1874 = vpop.f32.mrb[0].mxu0
    %v1875 = vadd.f32 %v1646, %v1874
    %v1876 = vpop.f32.mrb[0].mxu0
    %v1877 = vpop.f32.mrb[0].mxu0
    %v1878 = vpop.f32.mrb[0].mxu0
    %1879 = vdwg.mxu0
    %1880 = vmatprep.subr.bf16.mxu0 0
    %1881 = vmatpush1.bf16.msra.mxu0 %v1792
    %1882 = vmatprep.subr.bf16.mxu0 0
    %1883 = vmatpush1.bf16.msra.mxu0 %v1793
    %1884 = vmatprep.subr.bf16.mxu0 0
    %1885 = vmatpush1.bf16.msra.mxu0 %v1794
    %1886 = vmatprep.subr.bf16.mxu0 0
    %1887 = vmatpush1.bf16.msra.mxu0 %v1795
    %1888 = vmatprep.subr.bf16.mxu0 0
    %1889 = vmatpush1.bf16.msra.mxu0 %v1796
    %1890 = vmatprep.subr.bf16.mxu0 0
    %1891 = vmatpush1.bf16.msra.mxu0 %v1797
    %1892 = vmatprep.subr.bf16.mxu0 0
    %1893 = vmatpush1.bf16.msra.mxu0 %v1798
    %1894 = vmatprep.subr.bf16.mxu0 0
    %1895 = vmatpush1.bf16.msra.mxu0 %v1799
    %1896 = vmatprep.subr.bf16.mxu0 0
    %1897 = vmatpush1.bf16.msra.mxu0 %v1800
    %1898 = vmatprep.subr.bf16.mxu0 0
    %1899 = vmatpush1.bf16.msra.mxu0 %v1801
    %1900 = vmatprep.subr.bf16.mxu0 0
    %1901 = vmatpush1.bf16.msra.mxu0 %v1802
    %1902 = vmatprep.subr.bf16.mxu0 0
    %1903 = vmatpush1.bf16.msra.mxu0 %v1803
    %1904 = vmatprep.subr.bf16.mxu0 0
    %1905 = vmatpush1.bf16.msra.mxu0 %v1804
    %1906 = vmatprep.subr.bf16.mxu0 0
    %1907 = vmatpush1.bf16.msra.mxu0 %v1805
    %1908 = vmatprep.subr.bf16.mxu0 0
    %1909 = vmatpush1.bf16.msra.mxu0 %v1806
    %1910 = vmatprep.subr.bf16.mxu0 0
    %1911 = vmatpush1.bf16.msra.mxu0 %v1807
    %1912 = vmatprep.mubr.bf16.mxu0 %v1576
    %1913 = vmatmul.mubr.bf16.gmra.mrb[0].mxu0 %v1575
    %v1914 = vpop.f32.mrb[0].mxu0
    %v1915 = vadd.f32 %v1875, %v1914
    %v1916 = vpop.f32.mrb[0].mxu0
    %v1917 = vpop.f32.mrb[0].mxu0
    %v1918 = vpop.f32.mrb[0].mxu0
    %1919 = vdwg.mxu0
    %1920 = vst [vmem:[#allocation14] sm:$0xff] %v1915
    // Predicated region
    $region58: #{tpu_custom_call.1} parent=1 // pred_check
      _
    $region59: #{tpu_custom_call.1} parent=1 // pred_check_branch
      %1922 = sbr.rel (0) target = $region61
    $region60: #{tpu_custom_call.1} parent=1 // pred_region
      %s1924 = ssub.s32 128, 128
      %1925 = vsyncadd [#allocation4], %s1924
      %s1927 = sshll.u32 [#allocation14], 4
      %s1928 = int_to_ptr.vmem [resolvable:$true] %s1927
      %1930 = dma.vmem_to_hbm [thread:$0]  %s1928, 128, %s7, [#allocation4]
    $region61: #{tpu_custom_call.1} parent=1 // pred_fallthru
      _
    // Predicated region
    $region62: #{tpu_custom_call.1} parent=1 // pred_check
      _
    $region63: #{tpu_custom_call.1} parent=1 // pred_check_branch
      %1932 = sbr.rel (0) target = $region65
    $region64: #{tpu_custom_call.1} parent=1 // pred_region
      %1933 = dma.done [#allocation4], 128
    $region65: #{tpu_custom_call.1} parent=1 // pred_fallthru
      _
    %1934 = vsyncpa [#allocation3], 1
    %1935 = vsyncpa [#allocation6], 1
    %1936 = vsyncpa [#allocation9], 1
    %1937 = vsyncpa [#allocation12], 1
    %1938 = vsyncpa [#allocation4], 1

</llo_original>
